<compile_context>
chip_gen: v6e
topology: v6e:2x2x1
jax: 0.10.0
libtpu: 0.0.40
codegen_flags: <defaults>
</compile_context>

<pallas_src>
import functools

import jax
import jax.numpy as jnp
from jax.experimental import pallas as pl
from jax.experimental.pallas import tpu as pltpu

KSIZE = 3
C_OUT = 32
CHUNK = 512          # lane-chunk of the pooled (Lout) axis streamed per step
MAX_TILE_B = 512     # cap on the batch tile


def cnn_kernel(x_ref, w_ref, b_ref, o_ref, *, compute_dtype, chunk):
    # x_ref: (TB, L) f32, w_ref: (C, K) f32, b_ref: (C, 1) f32, o_ref: (C, TB) f32
    TB, L = x_ref.shape
    C, K = w_ref.shape
    Lout = L - K + 1
    inv_lout = 1.0 / float(Lout)          # fold mean's divide into a constant

    w = w_ref[...].astype(compute_dtype)         # (C, K), resident
    bias = b_ref[...].astype(compute_dtype)      # (C, 1)
    bias3 = bias[:, :, None]                     # (C, 1, 1)

    # Pooled accumulator, lane-dense over batch: (C, TB), always f32.
    pooled = jnp.zeros((C, TB), jnp.float32)

    # Stream the Lout axis in static lane chunks; each chunk's (C, TB, cs)
    # intermediate is consumed into `pooled` before the next chunk is built.
    for start in range(0, Lout, chunk):
        cs = min(chunk, Lout - start)

        # Conv1d(1->C, kernel=K, valid) on this chunk: K unrolled broadcast-MACs.
        acc = None
        for k in range(K):                       # K is a static Python int
            xk = x_ref[:, start + k:start + k + cs].astype(compute_dtype)   # (TB, cs)
            wk = w[:, k:k + 1][:, :, None]                                   # (C, 1, 1)
            term = xk[None, :, :] * wk                                       # (C, TB, cs)
            acc = term if acc is None else acc + term

        z = jnp.maximum(acc + bias3, 0)                       # bias + ReLU, compute_dtype
        pooled = pooled + jnp.sum(z.astype(jnp.float32), axis=-1)   # lane reduce -> (C, TB)

    # AdaptiveAvgPool1d(1): scale the pooled sum by the constant reciprocal.
    o_ref[...] = (pooled * inv_lout).astype(o_ref.dtype)      # (C, TB), batch on lanes


def _compute_dtype():
    # bf16 MAC/ReLU only where the VALU is bf16-capable (v6e / v7x); f32 elsewhere.
    try:
        kind = jax.devices()[0].device_kind.lower()
    except Exception:
        return jnp.float32
    if ("v6" in kind) or ("v7" in kind) or ("trillium" in kind):
        return jnp.bfloat16
    return jnp.float32


def _pick_tile_b(B):
    if B <= 128:
        return B            # single grid step; too small to split usefully
    # Multiple of 128 so the lane-dense (C, TB) output block stores unmasked,
    # and sized for >= 2 grid steps so v7x's two TensorCores both get work.
    tb = ((pl.cdiv(B, 2) + 127) // 128) * 128
    return min(tb, MAX_TILE_B)


def cnn_forward(x, w_ck, bias_c1, *, chunk=CHUNK):
    B, L = x.shape
    C, K = w_ck.shape
    assert L >= K, "Conv1d(valid) requires L >= kernel_size"
    Lout = L - K + 1

    TB = _pick_tile_b(B)
    grid = (pl.cdiv(B, TB),)
    compute_dtype = _compute_dtype()
    cs = min(chunk, Lout)
    itemsize = jnp.dtype(compute_dtype).itemsize

    # Per-step VMEM budget: double-buffered x tile + resident params +
    # double-buffered output + chunk temporaries (with margin).
    needed = (2 * TB * L * 4                 # input double-buffer
              + 2 * C * TB * 4               # output double-buffer
              + 2 * (C * K + C) * 4          # weights + bias
              + 6 * C * TB * cs * itemsize   # chunk intermediates (margin)
              + (2 << 20))                   # slack
    vmem_limit = int(min(max(needed, 32 << 20), 48 << 20))

    cost = pl.CostEstimate(
        flops=int(7 * B * C * Lout),         # ~7 VPU ops per (b, c, l) element
        transcendentals=0,
        bytes_accessed=int(4 * (B * L + B * C + C * K + C)),
    )

    kern = functools.partial(cnn_kernel, compute_dtype=compute_dtype, chunk=chunk)

    out_cb = pl.pallas_call(
        kern,
        out_shape=jax.ShapeDtypeStruct((C, B), jnp.float32),   # lane-dense: batch on lanes
        grid_spec=pltpu.PrefetchScalarGridSpec(
            num_scalar_prefetch=0,
            grid=grid,
            in_specs=[
                pl.BlockSpec((TB, L), lambda i: (i, 0)),   # batch-tiled activations
                pl.BlockSpec((C, K), lambda i: (0, 0)),    # weights stay resident
                pl.BlockSpec((C, 1), lambda i: (0, 0)),    # bias stays resident
            ],
            out_specs=pl.BlockSpec((C, TB), lambda i: (0, i)),
        ),
        compiler_params=pltpu.CompilerParams(
            dimension_semantics=("parallel",),             # batch axis: megacore-splittable
            vmem_limit_bytes=vmem_limit,
        ),
        cost_estimate=cost,
    )(x, w_ck, bias_c1)

    return out_cb.T                                        # (B, C), matches PyTorch


def reference_forward(x, w_ck, bias_c1):
    # Pure-JAX reference of the PyTorch forward pass (f32).
    B, L = x.shape
    C, K = w_ck.shape
    Lout = L - K + 1
    patches = jnp.stack([x[:, k:k + Lout] for k in range(K)], axis=2)   # (B, Lout, K)
    z = jnp.einsum("blk,ck->blc", patches, w_ck) + bias_c1[:, 0][None, None, :]
    z = jnp.maximum(z, 0.0)
    return jnp.mean(z, axis=1)                                          # (B, C)


def _check(x, w_ck, bias_c1, atol, rtol):
    out = jax.block_until_ready(cnn_forward(x, w_ck, bias_c1))
    ref = reference_forward(x, w_ck, bias_c1)
    assert out.shape == ref.shape
    assert jnp.allclose(out, ref, atol=atol, rtol=rtol), (
        f"max abs err {jnp.max(jnp.abs(out - ref))}")
    return out


if __name__ == "__main__":
    key = jax.random.PRNGKey(0)
    k_x, k_w, k_b, k_x2 = jax.random.split(key, 4)

    # Deterministic parameter init mimicking PyTorch Conv1d default:
    # uniform(-sqrt(1/(in_ch*K)), sqrt(1/(in_ch*K))) with in_ch=1, K=3.
    bound = (1.0 / (1 * KSIZE)) ** 0.5
    w = jax.random.uniform(k_w, (C_OUT, 1, KSIZE), jnp.float32, -bound, bound)
    b = jax.random.uniform(k_b, (C_OUT,), jnp.float32, -bound, bound)

    # Kernel-friendly parameter layouts: (C_out, K) and (C_out, 1).
    w_ck = w[:, 0, :]                 # (C_OUT, K)
    bias_c1 = b.reshape(C_OUT, 1)     # (C_OUT, 1)

    # Looser tolerance if the bf16 MAC path is active (v6e / v7x).
    if _compute_dtype() == jnp.bfloat16:
        atol = rtol = 3e-2
    else:
        atol = rtol = 1e-5

    # Small-shape test from the module spec: B=2, L=16 (single grid step).
    x = jax.random.normal(k_x, (2, 16), jnp.float32)
    out = _check(x, w_ck, bias_c1, atol, rtol)
    assert out.shape == (2, C_OUT)

    # Multi-tile test: exercises B > TB with a padded last block (B=260, L=64).
    x2 = jax.random.normal(k_x2, (260, 64), jnp.float32)
    out2 = _check(x2, w_ck, bias_c1, atol, rtol)
    assert out2.shape == (260, C_OUT)

    print("KERNEL_OK")
</pallas_src>

<mosaic_0001>
module attributes {stable_mosaic.version = 11 : i64} {
  func.func @cnn_kernel(%arg0: i32, %arg1: memref<2x16xf32, #tpu.memory_space<vmem>>, %arg2: memref<32x3xf32, #tpu.memory_space<vmem>>, %arg3: memref<32x1xf32, #tpu.memory_space<vmem>>, %arg4: memref<32x2xf32, #tpu.memory_space<vmem>>) attributes {dimension_semantics = [#tpu.dimension_semantics<parallel>], iteration_bounds = array<i64: 1>, scalar_prefetch = 0 : i64, scratch_operands = 0 : i64, tpu.core_type = #tpu.core_type<tc>, window_params = [{transform_indices = @transform_0, window_bounds = array<i64: 2, 16>}, {pipeline_mode = #tpu.pipeline_mode<synchronous>, transform_indices = @transform_1, window_bounds = array<i64: 32, 3>}, {pipeline_mode = #tpu.pipeline_mode<synchronous>, transform_indices = @transform_2, window_bounds = array<i64: 32, 1>}, {transform_indices = @transform_3, window_bounds = array<i64: 32, 2>}]} {
    %c0 = arith.constant 0 : index
    %c0_0 = arith.constant 0 : index
    %0 = vector.load %arg2[%c0, %c0_0] : memref<32x3xf32, #tpu.memory_space<vmem>>, vector<32x3xf32>
    %c0_1 = arith.constant 0 : index
    %c0_2 = arith.constant 0 : index
    %1 = vector.load %arg3[%c0_1, %c0_2] : memref<32x1xf32, #tpu.memory_space<vmem>>, vector<32x1xf32>
    %2 = vector.shape_cast %1 : vector<32x1xf32> to vector<32x1x1xf32>
    %cst = arith.constant 0.000000e+00 : f32
    %3 = vector.broadcast %cst : f32 to vector<32x2xf32>
    %c0_3 = arith.constant 0 : index
    %c0_4 = arith.constant 0 : index
    %4 = vector.load %arg1[%c0_3, %c0_4] : memref<2x16xf32, #tpu.memory_space<vmem>>, vector<2x14xf32>
    %5 = vector.extract_strided_slice %0 {offsets = [0, 0], sizes = [32, 1], strides = [1, 1]} : vector<32x3xf32> to vector<32x1xf32>
    %6 = vector.shape_cast %5 : vector<32x1xf32> to vector<32x1x1xf32>
    %7 = vector.shape_cast %4 : vector<2x14xf32> to vector<1x2x14xf32>
    %8 = vector.broadcast %7 : vector<1x2x14xf32> to vector<32x2x14xf32>
    %9 = vector.broadcast %6 : vector<32x1x1xf32> to vector<32x2x14xf32>
    %10 = arith.mulf %8, %9 : vector<32x2x14xf32>
    %c0_5 = arith.constant 0 : index
    %c1 = arith.constant 1 : index
    %11 = vector.load %arg1[%c0_5, %c1] : memref<2x16xf32, #tpu.memory_space<vmem>>, vector<2x14xf32>
    %12 = vector.extract_strided_slice %0 {offsets = [0, 1], sizes = [32, 1], strides = [1, 1]} : vector<32x3xf32> to vector<32x1xf32>
    %13 = vector.shape_cast %12 : vector<32x1xf32> to vector<32x1x1xf32>
    %14 = vector.shape_cast %11 : vector<2x14xf32> to vector<1x2x14xf32>
    %15 = vector.broadcast %14 : vector<1x2x14xf32> to vector<32x2x14xf32>
    %16 = vector.broadcast %13 : vector<32x1x1xf32> to vector<32x2x14xf32>
    %17 = arith.mulf %15, %16 : vector<32x2x14xf32>
    %18 = arith.addf %10, %17 : vector<32x2x14xf32>
    %c0_6 = arith.constant 0 : index
    %c2 = arith.constant 2 : index
    %19 = vector.load %arg1[%c0_6, %c2] : memref<2x16xf32, #tpu.memory_space<vmem>>, vector<2x14xf32>
    %20 = vector.extract_strided_slice %0 {offsets = [0, 2], sizes = [32, 1], strides = [1, 1]} : vector<32x3xf32> to vector<32x1xf32>
    %21 = vector.shape_cast %20 : vector<32x1xf32> to vector<32x1x1xf32>
    %22 = vector.shape_cast %19 : vector<2x14xf32> to vector<1x2x14xf32>
    %23 = vector.broadcast %22 : vector<1x2x14xf32> to vector<32x2x14xf32>
    %24 = vector.broadcast %21 : vector<32x1x1xf32> to vector<32x2x14xf32>
    %25 = arith.mulf %23, %24 : vector<32x2x14xf32>
    %26 = arith.addf %18, %25 : vector<32x2x14xf32>
    %27 = vector.broadcast %2 : vector<32x1x1xf32> to vector<32x2x14xf32>
    %28 = arith.addf %26, %27 : vector<32x2x14xf32>
    %cst_7 = arith.constant 0.000000e+00 : f32
    %29 = vector.broadcast %cst_7 : f32 to vector<32x2x14xf32>
    %30 = arith.maximumf %28, %29 : vector<32x2x14xf32>
    %cst_8 = arith.constant dense<0.000000e+00> : vector<32x2xf32>
    %31 = vector.multi_reduction <add>, %30, %cst_8 [2] : vector<32x2x14xf32> to vector<32x2xf32>
    %32 = arith.addf %3, %31 : vector<32x2xf32>
    %cst_9 = arith.constant 0.0714285746 : f32
    %33 = vector.broadcast %cst_9 : f32 to vector<32x2xf32>
    %34 = arith.mulf %32, %33 : vector<32x2xf32>
    %c0_10 = arith.constant 0 : index
    %c0_11 = arith.constant 0 : index
    %35 = vector.load %arg4[%c0_10, %c0_11] : memref<32x2xf32, #tpu.memory_space<vmem>>, vector<32x2xf32>
    tpu.vector_store %arg4[%c0_10, %c0_11], %34 {strides = array<i32>} : memref<32x2xf32, #tpu.memory_space<vmem>>, vector<32x2xf32>,
    return
  }
  func.func @transform_0(%arg0: i32) -> (i32, i32) {
    %c0_i32 = arith.constant 0 : i32
    %c0_i32_0 = arith.constant 0 : i32
    return %arg0, %c0_i32 : i32, i32
  }
  func.func @transform_1(%arg0: i32) -> (i32, i32) {
    %c0_i32 = arith.constant 0 : i32
    %c0_i32_0 = arith.constant 0 : i32
    %c0_i32_1 = arith.constant 0 : i32
    return %c0_i32, %c0_i32_0 : i32, i32
  }
  func.func @transform_2(%arg0: i32) -> (i32, i32) {
    %c0_i32 = arith.constant 0 : i32
    %c0_i32_0 = arith.constant 0 : i32
    %c0_i32_1 = arith.constant 0 : i32
    return %c0_i32, %c0_i32_0 : i32, i32
  }
  func.func @transform_3(%arg0: i32) -> (i32, i32) {
    %c0_i32 = arith.constant 0 : i32
    %c0_i32_0 = arith.constant 0 : i32
    return %c0_i32, %arg0 : i32, i32
  }
}

</mosaic_0001>

<llo_original>
// kernel: tpu_custom_call.1
$region0: #{tpu_custom_call.1}
  #allocation0 [shape = 'u32[]', space=smem, size = 0x4, offset = 0x4, fixed_abs, tag = 'smem constant byte address 0x4 - core index']
  #allocation1 [shape = 'u32[144,128]{1,0:T(1,128)}', space=vmem, size = 0x12000, scoped, tag = 'internal scratch']
  %s0 = inlined_call_operand.vmem [shape: f32[2,16], index: 0, kind: input, shape index: {}]
  %s1 = inlined_call_operand.vmem [shape: f32[32,3], index: 1, kind: input, shape index: {}]
  %s2 = inlined_call_operand.vmem [shape: f32[32,1], index: 2, kind: input, shape index: {}]
  %s3 = inlined_call_operand.vmem [shape: f32[32,2], index: 3, kind: output, shape index: {}]
  %s4 = sld [smem:[#allocation0]]
  $region22: #{tpu_custom_call.1} parent=0
    _
  %s6 = ssub.s32 1, %s4
  %s7 = scalar_select 0, %s6, %s4
  // Predicated region
  $region2: #{tpu_custom_call.1} parent=0 // pred_check
    _
  $region3: #{tpu_custom_call.1} parent=0 // pred_check_branch
    %9 = sbr.rel (0) target = $region5
  $region4: #{tpu_custom_call.1} parent=0 // pred_region
    _
  $region5: #{tpu_custom_call.1} parent=0 // pred_fallthru
    _
  // Predicated region
  $region6: #{tpu_custom_call.1} parent=0 // pred_check
    _
  $region7: #{tpu_custom_call.1} parent=0 // pred_check_branch
    %11 = sbr.rel (0) target = $region9
  $region8: #{tpu_custom_call.1} parent=0 // pred_region
    _
  $region9: #{tpu_custom_call.1} parent=0 // pred_fallthru
    _
  // Predicated region
  $region10: #{tpu_custom_call.1} parent=0 // pred_check
    _
  $region11: #{tpu_custom_call.1} parent=0 // pred_check_branch
    %13 = sbr.rel (0) target = $region13
  $region12: #{tpu_custom_call.1} parent=0 // pred_region
    _
  $region13: #{tpu_custom_call.1} parent=0 // pred_fallthru
    _
  %v14 = vld [vmem:[%s1] sm:$0xff]
  %v15 = vld [vmem:[%s1 + $0x8] sm:$0xff]
  %v16 = vld [vmem:[%s1 + $0x10] sm:$0xff]
  %v17 = vld [vmem:[%s1 + $0x18] sm:$0xff]
  %v18 = vld [vmem:[%s2] sm:$0xff]
  %v19 = vld [vmem:[%s2 + $0x8] sm:$0xff]
  %v20 = vld [vmem:[%s2 + $0x10] sm:$0xff]
  %v21 = vld [vmem:[%s2 + $0x18] sm:$0xff]
  %v26 = vcombine.high %v18, %v18
  %v28 = vunpack.c.l.s4 1966171168
  %v29 = vunpack.c.0.s8 %v28
  %v30 = vlaneseq
  %v31 = vshrl.u32 %v30, 7
  %v32 = vsub.s32 %v29, %v31
  %v33 = vrot.slane %v18, %v32
  %v35 = vunpack.c.l.s4 1966171168
  %v36 = vunpack.c.0.s8 %v35
  %v37 = vlaneseq
  %v38 = vshrl.u32 %v37, 7
  %v39 = vsub.s32 %v36, %v38
  %v40 = vrot.slane %v26, %v39
  %v41 = vcombine.high %v33, %v33
  %v42 = vcombine.high %v40, %v40
  %v44 = vunpack.c.l.s4 1966171168
  %v45 = vunpack.c.0.s8 %v44
  %v46 = vlaneseq
  %v47 = vshrl.u32 %v46, 7
  %v48 = vsub.s32 %v45, %v47
  %v49 = vrot.slane %v33, %v48
  %v51 = vunpack.c.l.s4 1966171168
  %v52 = vunpack.c.0.s8 %v51
  %v53 = vlaneseq
  %v54 = vshrl.u32 %v53, 7
  %v55 = vsub.s32 %v52, %v54
  %v56 = vrot.slane %v40, %v55
  %v58 = vunpack.c.l.s4 1966171168
  %v59 = vunpack.c.0.s8 %v58
  %v60 = vlaneseq
  %v61 = vshrl.u32 %v60, 7
  %v62 = vsub.s32 %v59, %v61
  %v63 = vrot.slane %v41, %v62
  %v65 = vunpack.c.l.s4 1966171168
  %v66 = vunpack.c.0.s8 %v65
  %v67 = vlaneseq
  %v68 = vshrl.u32 %v67, 7
  %v69 = vsub.s32 %v66, %v68
  %v70 = vrot.slane %v42, %v69
  %v71 = vcombine.high %v49, %v49
  %v72 = vcombine.high %v56, %v56
  %v73 = vcombine.high %v63, %v63
  %v74 = vcombine.high %v70, %v70
  %v75 = vcombine.high %v19, %v19
  %v77 = vunpack.c.l.s4 1966171168
  %v78 = vunpack.c.0.s8 %v77
  %v79 = vlaneseq
  %v80 = vshrl.u32 %v79, 7
  %v81 = vsub.s32 %v78, %v80
  %v82 = vrot.slane %v19, %v81
  %v84 = vunpack.c.l.s4 1966171168
  %v85 = vunpack.c.0.s8 %v84
  %v86 = vlaneseq
  %v87 = vshrl.u32 %v86, 7
  %v88 = vsub.s32 %v85, %v87
  %v89 = vrot.slane %v75, %v88
  %v90 = vcombine.high %v82, %v82
  %v91 = vcombine.high %v89, %v89
  %v93 = vunpack.c.l.s4 1966171168
  %v94 = vunpack.c.0.s8 %v93
  %v95 = vlaneseq
  %v96 = vshrl.u32 %v95, 7
  %v97 = vsub.s32 %v94, %v96
  %v98 = vrot.slane %v82, %v97
  %v100 = vunpack.c.l.s4 1966171168
  %v101 = vunpack.c.0.s8 %v100
  %v102 = vlaneseq
  %v103 = vshrl.u32 %v102, 7
  %v104 = vsub.s32 %v101, %v103
  %v105 = vrot.slane %v89, %v104
  %v107 = vunpack.c.l.s4 1966171168
  %v108 = vunpack.c.0.s8 %v107
  %v109 = vlaneseq
  %v110 = vshrl.u32 %v109, 7
  %v111 = vsub.s32 %v108, %v110
  %v112 = vrot.slane %v90, %v111
  %v114 = vunpack.c.l.s4 1966171168
  %v115 = vunpack.c.0.s8 %v114
  %v116 = vlaneseq
  %v117 = vshrl.u32 %v116, 7
  %v118 = vsub.s32 %v115, %v117
  %v119 = vrot.slane %v91, %v118
  %v120 = vcombine.high %v98, %v98
  %v121 = vcombine.high %v105, %v105
  %v122 = vcombine.high %v112, %v112
  %v123 = vcombine.high %v119, %v119
  %v124 = vcombine.high %v20, %v20
  %v126 = vunpack.c.l.s4 1966171168
  %v127 = vunpack.c.0.s8 %v126
  %v128 = vlaneseq
  %v129 = vshrl.u32 %v128, 7
  %v130 = vsub.s32 %v127, %v129
  %v131 = vrot.slane %v20, %v130
  %v133 = vunpack.c.l.s4 1966171168
  %v134 = vunpack.c.0.s8 %v133
  %v135 = vlaneseq
  %v136 = vshrl.u32 %v135, 7
  %v137 = vsub.s32 %v134, %v136
  %v138 = vrot.slane %v124, %v137
  %v139 = vcombine.high %v131, %v131
  %v140 = vcombine.high %v138, %v138
  %v142 = vunpack.c.l.s4 1966171168
  %v143 = vunpack.c.0.s8 %v142
  %v144 = vlaneseq
  %v145 = vshrl.u32 %v144, 7
  %v146 = vsub.s32 %v143, %v145
  %v147 = vrot.slane %v131, %v146
  %v149 = vunpack.c.l.s4 1966171168
  %v150 = vunpack.c.0.s8 %v149
  %v151 = vlaneseq
  %v152 = vshrl.u32 %v151, 7
  %v153 = vsub.s32 %v150, %v152
  %v154 = vrot.slane %v138, %v153
  %v156 = vunpack.c.l.s4 1966171168
  %v157 = vunpack.c.0.s8 %v156
  %v158 = vlaneseq
  %v159 = vshrl.u32 %v158, 7
  %v160 = vsub.s32 %v157, %v159
  %v161 = vrot.slane %v139, %v160
  %v163 = vunpack.c.l.s4 1966171168
  %v164 = vunpack.c.0.s8 %v163
  %v165 = vlaneseq
  %v166 = vshrl.u32 %v165, 7
  %v167 = vsub.s32 %v164, %v166
  %v168 = vrot.slane %v140, %v167
  %v169 = vcombine.high %v147, %v147
  %v170 = vcombine.high %v154, %v154
  %v171 = vcombine.high %v161, %v161
  %v172 = vcombine.high %v168, %v168
  %v173 = vcombine.high %v21, %v21
  %v175 = vunpack.c.l.s4 1966171168
  %v176 = vunpack.c.0.s8 %v175
  %v177 = vlaneseq
  %v178 = vshrl.u32 %v177, 7
  %v179 = vsub.s32 %v176, %v178
  %v180 = vrot.slane %v21, %v179
  %v182 = vunpack.c.l.s4 1966171168
  %v183 = vunpack.c.0.s8 %v182
  %v184 = vlaneseq
  %v185 = vshrl.u32 %v184, 7
  %v186 = vsub.s32 %v183, %v185
  %v187 = vrot.slane %v173, %v186
  %v188 = vcombine.high %v180, %v180
  %v189 = vcombine.high %v187, %v187
  %v191 = vunpack.c.l.s4 1966171168
  %v192 = vunpack.c.0.s8 %v191
  %v193 = vlaneseq
  %v194 = vshrl.u32 %v193, 7
  %v195 = vsub.s32 %v192, %v194
  %v196 = vrot.slane %v180, %v195
  %v198 = vunpack.c.l.s4 1966171168
  %v199 = vunpack.c.0.s8 %v198
  %v200 = vlaneseq
  %v201 = vshrl.u32 %v200, 7
  %v202 = vsub.s32 %v199, %v201
  %v203 = vrot.slane %v187, %v202
  %v205 = vunpack.c.l.s4 1966171168
  %v206 = vunpack.c.0.s8 %v205
  %v207 = vlaneseq
  %v208 = vshrl.u32 %v207, 7
  %v209 = vsub.s32 %v206, %v208
  %v210 = vrot.slane %v188, %v209
  %v212 = vunpack.c.l.s4 1966171168
  %v213 = vunpack.c.0.s8 %v212
  %v214 = vlaneseq
  %v215 = vshrl.u32 %v214, 7
  %v216 = vsub.s32 %v213, %v215
  %v217 = vrot.slane %v189, %v216
  %v218 = vcombine.high %v196, %v196
  %v219 = vcombine.high %v203, %v203
  %v220 = vcombine.high %v210, %v210
  %v221 = vcombine.high %v217, %v217
  %v222 = vld [vmem:[%s0] sm:$0x3]
  %v227 = vcombine.high %v14, %v14
  %v229 = vunpack.c.l.s4 1966171168
  %v230 = vunpack.c.0.s8 %v229
  %v231 = vlaneseq
  %v232 = vshrl.u32 %v231, 7
  %v233 = vsub.s32 %v230, %v232
  %v234 = vrot.slane %v14, %v233
  %v236 = vunpack.c.l.s4 1966171168
  %v237 = vunpack.c.0.s8 %v236
  %v238 = vlaneseq
  %v239 = vshrl.u32 %v238, 7
  %v240 = vsub.s32 %v237, %v239
  %v241 = vrot.slane %v227, %v240
  %v242 = vcombine.high %v234, %v234
  %v243 = vcombine.high %v241, %v241
  %v245 = vunpack.c.l.s4 1966171168
  %v246 = vunpack.c.0.s8 %v245
  %v247 = vlaneseq
  %v248 = vshrl.u32 %v247, 7
  %v249 = vsub.s32 %v246, %v248
  %v250 = vrot.slane %v234, %v249
  %v252 = vunpack.c.l.s4 1966171168
  %v253 = vunpack.c.0.s8 %v252
  %v254 = vlaneseq
  %v255 = vshrl.u32 %v254, 7
  %v256 = vsub.s32 %v253, %v255
  %v257 = vrot.slane %v241, %v256
  %v259 = vunpack.c.l.s4 1966171168
  %v260 = vunpack.c.0.s8 %v259
  %v261 = vlaneseq
  %v262 = vshrl.u32 %v261, 7
  %v263 = vsub.s32 %v260, %v262
  %v264 = vrot.slane %v242, %v263
  %v266 = vunpack.c.l.s4 1966171168
  %v267 = vunpack.c.0.s8 %v266
  %v268 = vlaneseq
  %v269 = vshrl.u32 %v268, 7
  %v270 = vsub.s32 %v267, %v269
  %v271 = vrot.slane %v243, %v270
  %v272 = vcombine.high %v250, %v250
  %v273 = vcombine.high %v257, %v257
  %v274 = vcombine.high %v264, %v264
  %v275 = vcombine.high %v271, %v271
  %v276 = vcombine.high %v15, %v15
  %v278 = vunpack.c.l.s4 1966171168
  %v279 = vunpack.c.0.s8 %v278
  %v280 = vlaneseq
  %v281 = vshrl.u32 %v280, 7
  %v282 = vsub.s32 %v279, %v281
  %v283 = vrot.slane %v15, %v282
  %v285 = vunpack.c.l.s4 1966171168
  %v286 = vunpack.c.0.s8 %v285
  %v287 = vlaneseq
  %v288 = vshrl.u32 %v287, 7
  %v289 = vsub.s32 %v286, %v288
  %v290 = vrot.slane %v276, %v289
  %v291 = vcombine.high %v283, %v283
  %v292 = vcombine.high %v290, %v290
  %v294 = vunpack.c.l.s4 1966171168
  %v295 = vunpack.c.0.s8 %v294
  %v296 = vlaneseq
  %v297 = vshrl.u32 %v296, 7
  %v298 = vsub.s32 %v295, %v297
  %v299 = vrot.slane %v283, %v298
  %v301 = vunpack.c.l.s4 1966171168
  %v302 = vunpack.c.0.s8 %v301
  %v303 = vlaneseq
  %v304 = vshrl.u32 %v303, 7
  %v305 = vsub.s32 %v302, %v304
  %v306 = vrot.slane %v290, %v305
  %v308 = vunpack.c.l.s4 1966171168
  %v309 = vunpack.c.0.s8 %v308
  %v310 = vlaneseq
  %v311 = vshrl.u32 %v310, 7
  %v312 = vsub.s32 %v309, %v311
  %v313 = vrot.slane %v291, %v312
  %v315 = vunpack.c.l.s4 1966171168
  %v316 = vunpack.c.0.s8 %v315
  %v317 = vlaneseq
  %v318 = vshrl.u32 %v317, 7
  %v319 = vsub.s32 %v316, %v318
  %v320 = vrot.slane %v292, %v319
  %v321 = vcombine.high %v299, %v299
  %v322 = vcombine.high %v306, %v306
  %v323 = vcombine.high %v313, %v313
  %v324 = vcombine.high %v320, %v320
  %v325 = vcombine.high %v16, %v16
  %v327 = vunpack.c.l.s4 1966171168
  %v328 = vunpack.c.0.s8 %v327
  %v329 = vlaneseq
  %v330 = vshrl.u32 %v329, 7
  %v331 = vsub.s32 %v328, %v330
  %v332 = vrot.slane %v16, %v331
  %v334 = vunpack.c.l.s4 1966171168
  %v335 = vunpack.c.0.s8 %v334
  %v336 = vlaneseq
  %v337 = vshrl.u32 %v336, 7
  %v338 = vsub.s32 %v335, %v337
  %v339 = vrot.slane %v325, %v338
  %v340 = vcombine.high %v332, %v332
  %v341 = vcombine.high %v339, %v339
  %v343 = vunpack.c.l.s4 1966171168
  %v344 = vunpack.c.0.s8 %v343
  %v345 = vlaneseq
  %v346 = vshrl.u32 %v345, 7
  %v347 = vsub.s32 %v344, %v346
  %v348 = vrot.slane %v332, %v347
  %v350 = vunpack.c.l.s4 1966171168
  %v351 = vunpack.c.0.s8 %v350
  %v352 = vlaneseq
  %v353 = vshrl.u32 %v352, 7
  %v354 = vsub.s32 %v351, %v353
  %v355 = vrot.slane %v339, %v354
  %v357 = vunpack.c.l.s4 1966171168
  %v358 = vunpack.c.0.s8 %v357
  %v359 = vlaneseq
  %v360 = vshrl.u32 %v359, 7
  %v361 = vsub.s32 %v358, %v360
  %v362 = vrot.slane %v340, %v361
  %v364 = vunpack.c.l.s4 1966171168
  %v365 = vunpack.c.0.s8 %v364
  %v366 = vlaneseq
  %v367 = vshrl.u32 %v366, 7
  %v368 = vsub.s32 %v365, %v367
  %v369 = vrot.slane %v341, %v368
  %v370 = vcombine.high %v348, %v348
  %v371 = vcombine.high %v355, %v355
  %v372 = vcombine.high %v362, %v362
  %v373 = vcombine.high %v369, %v369
  %v374 = vcombine.high %v17, %v17
  %v376 = vunpack.c.l.s4 1966171168
  %v377 = vunpack.c.0.s8 %v376
  %v378 = vlaneseq
  %v379 = vshrl.u32 %v378, 7
  %v380 = vsub.s32 %v377, %v379
  %v381 = vrot.slane %v17, %v380
  %v383 = vunpack.c.l.s4 1966171168
  %v384 = vunpack.c.0.s8 %v383
  %v385 = vlaneseq
  %v386 = vshrl.u32 %v385, 7
  %v387 = vsub.s32 %v384, %v386
  %v388 = vrot.slane %v374, %v387
  %v389 = vcombine.high %v381, %v381
  %v390 = vcombine.high %v388, %v388
  %v392 = vunpack.c.l.s4 1966171168
  %v393 = vunpack.c.0.s8 %v392
  %v394 = vlaneseq
  %v395 = vshrl.u32 %v394, 7
  %v396 = vsub.s32 %v393, %v395
  %v397 = vrot.slane %v381, %v396
  %v399 = vunpack.c.l.s4 1966171168
  %v400 = vunpack.c.0.s8 %v399
  %v401 = vlaneseq
  %v402 = vshrl.u32 %v401, 7
  %v403 = vsub.s32 %v400, %v402
  %v404 = vrot.slane %v388, %v403
  %v406 = vunpack.c.l.s4 1966171168
  %v407 = vunpack.c.0.s8 %v406
  %v408 = vlaneseq
  %v409 = vshrl.u32 %v408, 7
  %v410 = vsub.s32 %v407, %v409
  %v411 = vrot.slane %v389, %v410
  %v413 = vunpack.c.l.s4 1966171168
  %v414 = vunpack.c.0.s8 %v413
  %v415 = vlaneseq
  %v416 = vshrl.u32 %v415, 7
  %v417 = vsub.s32 %v414, %v416
  %v418 = vrot.slane %v390, %v417
  %v419 = vcombine.high %v397, %v397
  %v420 = vcombine.high %v404, %v404
  %v421 = vcombine.high %v411, %v411
  %v422 = vcombine.high %v418, %v418
  %v423 = vlaneseq
  %v424 = vshrl.u32 %v423, 7
  %v425 = vsub.s32 0, %v424
  %v426 = vrot.slane %v250, %v425
  %v427 = vlaneseq
  %v428 = vshrl.u32 %v427, 7
  %v429 = vsub.s32 0, %v428
  %v430 = vrot.slane %v264, %v429
  %v431 = vlaneseq
  %v432 = vshrl.u32 %v431, 7
  %v433 = vsub.s32 0, %v432
  %v434 = vrot.slane %v272, %v433
  %v435 = vlaneseq
  %v436 = vshrl.u32 %v435, 7
  %v437 = vsub.s32 0, %v436
  %v438 = vrot.slane %v274, %v437
  %v439 = vlaneseq
  %v440 = vshrl.u32 %v439, 7
  %v441 = vsub.s32 0, %v440
  %v442 = vrot.slane %v257, %v441
  %v443 = vlaneseq
  %v444 = vshrl.u32 %v443, 7
  %v445 = vsub.s32 0, %v444
  %v446 = vrot.slane %v271, %v445
  %v447 = vlaneseq
  %v448 = vshrl.u32 %v447, 7
  %v449 = vsub.s32 0, %v448
  %v450 = vrot.slane %v273, %v449
  %v451 = vlaneseq
  %v452 = vshrl.u32 %v451, 7
  %v453 = vsub.s32 0, %v452
  %v454 = vrot.slane %v275, %v453
  %v455 = vlaneseq
  %v456 = vshrl.u32 %v455, 7
  %v457 = vsub.s32 0, %v456
  %v458 = vrot.slane %v299, %v457
  %v459 = vlaneseq
  %v460 = vshrl.u32 %v459, 7
  %v461 = vsub.s32 0, %v460
  %v462 = vrot.slane %v313, %v461
  %v463 = vlaneseq
  %v464 = vshrl.u32 %v463, 7
  %v465 = vsub.s32 0, %v464
  %v466 = vrot.slane %v321, %v465
  %v467 = vlaneseq
  %v468 = vshrl.u32 %v467, 7
  %v469 = vsub.s32 0, %v468
  %v470 = vrot.slane %v323, %v469
  %v471 = vlaneseq
  %v472 = vshrl.u32 %v471, 7
  %v473 = vsub.s32 0, %v472
  %v474 = vrot.slane %v306, %v473
  %v475 = vlaneseq
  %v476 = vshrl.u32 %v475, 7
  %v477 = vsub.s32 0, %v476
  %v478 = vrot.slane %v320, %v477
  %v479 = vlaneseq
  %v480 = vshrl.u32 %v479, 7
  %v481 = vsub.s32 0, %v480
  %v482 = vrot.slane %v322, %v481
  %v483 = vlaneseq
  %v484 = vshrl.u32 %v483, 7
  %v485 = vsub.s32 0, %v484
  %v486 = vrot.slane %v324, %v485
  %v487 = vlaneseq
  %v488 = vshrl.u32 %v487, 7
  %v489 = vsub.s32 0, %v488
  %v490 = vrot.slane %v348, %v489
  %v491 = vlaneseq
  %v492 = vshrl.u32 %v491, 7
  %v493 = vsub.s32 0, %v492
  %v494 = vrot.slane %v362, %v493
  %v495 = vlaneseq
  %v496 = vshrl.u32 %v495, 7
  %v497 = vsub.s32 0, %v496
  %v498 = vrot.slane %v370, %v497
  %v499 = vlaneseq
  %v500 = vshrl.u32 %v499, 7
  %v501 = vsub.s32 0, %v500
  %v502 = vrot.slane %v372, %v501
  %v503 = vlaneseq
  %v504 = vshrl.u32 %v503, 7
  %v505 = vsub.s32 0, %v504
  %v506 = vrot.slane %v355, %v505
  %v507 = vlaneseq
  %v508 = vshrl.u32 %v507, 7
  %v509 = vsub.s32 0, %v508
  %v510 = vrot.slane %v369, %v509
  %v511 = vlaneseq
  %v512 = vshrl.u32 %v511, 7
  %v513 = vsub.s32 0, %v512
  %v514 = vrot.slane %v371, %v513
  %v515 = vlaneseq
  %v516 = vshrl.u32 %v515, 7
  %v517 = vsub.s32 0, %v516
  %v518 = vrot.slane %v373, %v517
  %v519 = vlaneseq
  %v520 = vshrl.u32 %v519, 7
  %v521 = vsub.s32 0, %v520
  %v522 = vrot.slane %v397, %v521
  %v523 = vlaneseq
  %v524 = vshrl.u32 %v523, 7
  %v525 = vsub.s32 0, %v524
  %v526 = vrot.slane %v411, %v525
  %v527 = vlaneseq
  %v528 = vshrl.u32 %v527, 7
  %v529 = vsub.s32 0, %v528
  %v530 = vrot.slane %v419, %v529
  %v531 = vlaneseq
  %v532 = vshrl.u32 %v531, 7
  %v533 = vsub.s32 0, %v532
  %v534 = vrot.slane %v421, %v533
  %v535 = vlaneseq
  %v536 = vshrl.u32 %v535, 7
  %v537 = vsub.s32 0, %v536
  %v538 = vrot.slane %v404, %v537
  %v539 = vlaneseq
  %v540 = vshrl.u32 %v539, 7
  %v541 = vsub.s32 0, %v540
  %v542 = vrot.slane %v418, %v541
  %v543 = vlaneseq
  %v544 = vshrl.u32 %v543, 7
  %v545 = vsub.s32 0, %v544
  %v546 = vrot.slane %v420, %v545
  %v547 = vlaneseq
  %v548 = vshrl.u32 %v547, 7
  %v549 = vsub.s32 0, %v548
  %v550 = vrot.slane %v422, %v549
  %551 = vset.pattern.permute.xlu0 0
  %552 = vperm.xlu0 %551, %v426
  %v553 = vpop.permute.xlu0 %552
  %555 = vset.pattern.permute.xlu0 0
  %556 = vperm.xlu0 %555, %v430
  %v557 = vpop.permute.xlu0 %556
  %559 = vset.pattern.permute.xlu0 0
  %560 = vperm.xlu0 %559, %v434
  %v561 = vpop.permute.xlu0 %560
  %563 = vset.pattern.permute.xlu0 0
  %564 = vperm.xlu0 %563, %v438
  %v565 = vpop.permute.xlu0 %564
  %567 = vset.pattern.permute.xlu0 0
  %568 = vperm.xlu0 %567, %v442
  %v569 = vpop.permute.xlu0 %568
  %571 = vset.pattern.permute.xlu0 0
  %572 = vperm.xlu0 %571, %v446
  %v573 = vpop.permute.xlu0 %572
  %575 = vset.pattern.permute.xlu0 0
  %576 = vperm.xlu0 %575, %v450
  %v577 = vpop.permute.xlu0 %576
  %579 = vset.pattern.permute.xlu0 0
  %580 = vperm.xlu0 %579, %v454
  %v581 = vpop.permute.xlu0 %580
  %583 = vset.pattern.permute.xlu0 0
  %584 = vperm.xlu0 %583, %v458
  %v585 = vpop.permute.xlu0 %584
  %587 = vset.pattern.permute.xlu0 0
  %588 = vperm.xlu0 %587, %v462
  %v589 = vpop.permute.xlu0 %588
  %591 = vset.pattern.permute.xlu0 0
  %592 = vperm.xlu0 %591, %v466
  %v593 = vpop.permute.xlu0 %592
  %595 = vset.pattern.permute.xlu0 0
  %596 = vperm.xlu0 %595, %v470
  %v597 = vpop.permute.xlu0 %596
  %599 = vset.pattern.permute.xlu0 0
  %600 = vperm.xlu0 %599, %v474
  %v601 = vpop.permute.xlu0 %600
  %603 = vset.pattern.permute.xlu0 0
  %604 = vperm.xlu0 %603, %v478
  %v605 = vpop.permute.xlu0 %604
  %607 = vset.pattern.permute.xlu0 0
  %608 = vperm.xlu0 %607, %v482
  %v609 = vpop.permute.xlu0 %608
  %611 = vset.pattern.permute.xlu0 0
  %612 = vperm.xlu0 %611, %v486
  %v613 = vpop.permute.xlu0 %612
  %615 = vset.pattern.permute.xlu0 0
  %616 = vperm.xlu0 %615, %v490
  %v617 = vpop.permute.xlu0 %616
  %619 = vset.pattern.permute.xlu0 0
  %620 = vperm.xlu0 %619, %v494
  %v621 = vpop.permute.xlu0 %620
  %623 = vset.pattern.permute.xlu0 0
  %624 = vperm.xlu0 %623, %v498
  %v625 = vpop.permute.xlu0 %624
  %627 = vset.pattern.permute.xlu0 0
  %628 = vperm.xlu0 %627, %v502
  %v629 = vpop.permute.xlu0 %628
  %631 = vset.pattern.permute.xlu0 0
  %632 = vperm.xlu0 %631, %v506
  %v633 = vpop.permute.xlu0 %632
  %635 = vset.pattern.permute.xlu0 0
  %636 = vperm.xlu0 %635, %v510
  %v637 = vpop.permute.xlu0 %636
  %639 = vset.pattern.permute.xlu0 0
  %640 = vperm.xlu0 %639, %v514
  %v641 = vpop.permute.xlu0 %640
  %643 = vset.pattern.permute.xlu0 0
  %644 = vperm.xlu0 %643, %v518
  %v645 = vpop.permute.xlu0 %644
  %647 = vset.pattern.permute.xlu0 0
  %648 = vperm.xlu0 %647, %v522
  %v649 = vpop.permute.xlu0 %648
  %651 = vset.pattern.permute.xlu0 0
  %652 = vperm.xlu0 %651, %v526
  %v653 = vpop.permute.xlu0 %652
  %655 = vset.pattern.permute.xlu0 0
  %656 = vperm.xlu0 %655, %v530
  %v657 = vpop.permute.xlu0 %656
  %659 = vset.pattern.permute.xlu0 0
  %660 = vperm.xlu0 %659, %v534
  %v661 = vpop.permute.xlu0 %660
  %663 = vset.pattern.permute.xlu0 0
  %664 = vperm.xlu0 %663, %v538
  %v665 = vpop.permute.xlu0 %664
  %667 = vset.pattern.permute.xlu0 0
  %668 = vperm.xlu0 %667, %v542
  %v669 = vpop.permute.xlu0 %668
  %671 = vset.pattern.permute.xlu0 0
  %672 = vperm.xlu0 %671, %v546
  %v673 = vpop.permute.xlu0 %672
  %675 = vset.pattern.permute.xlu0 0
  %676 = vperm.xlu0 %675, %v550
  %v677 = vpop.permute.xlu0 %676
  %v679 = vmul.f32 %v222, %v553
  %v680 = vmul.f32 %v222, %v557
  %v681 = vmul.f32 %v222, %v561
  %v682 = vmul.f32 %v222, %v565
  %v683 = vmul.f32 %v222, %v569
  %v684 = vmul.f32 %v222, %v573
  %v685 = vmul.f32 %v222, %v577
  %v686 = vmul.f32 %v222, %v581
  %v687 = vmul.f32 %v222, %v585
  %v688 = vmul.f32 %v222, %v589
  %v689 = vmul.f32 %v222, %v593
  %v690 = vmul.f32 %v222, %v597
  %v691 = vmul.f32 %v222, %v601
  %v692 = vmul.f32 %v222, %v605
  %v693 = vmul.f32 %v222, %v609
  %v694 = vmul.f32 %v222, %v613
  %v695 = vmul.f32 %v222, %v617
  %v696 = vmul.f32 %v222, %v621
  %v697 = vmul.f32 %v222, %v625
  %v698 = vmul.f32 %v222, %v629
  %v699 = vmul.f32 %v222, %v633
  %v700 = vmul.f32 %v222, %v637
  %v701 = vmul.f32 %v222, %v641
  %v702 = vmul.f32 %v222, %v645
  %v703 = vmul.f32 %v222, %v649
  %v704 = vmul.f32 %v222, %v653
  %v705 = vmul.f32 %v222, %v657
  %v706 = vmul.f32 %v222, %v661
  %v707 = vmul.f32 %v222, %v665
  %v708 = vmul.f32 %v222, %v669
  %v709 = vmul.f32 %v222, %v673
  %v710 = vmul.f32 %v222, %v677
  %v711 = vld [vmem:[%s0] sm:$0x3]
  %712 = vset.pattern.permute.xlu0 1
  %713 = vperm.xlu0 %712, %v426
  %v714 = vpop.permute.xlu0 %713
  %716 = vset.pattern.permute.xlu0 1
  %717 = vperm.xlu0 %716, %v430
  %v718 = vpop.permute.xlu0 %717
  %720 = vset.pattern.permute.xlu0 1
  %721 = vperm.xlu0 %720, %v434
  %v722 = vpop.permute.xlu0 %721
  %724 = vset.pattern.permute.xlu0 1
  %725 = vperm.xlu0 %724, %v438
  %v726 = vpop.permute.xlu0 %725
  %728 = vset.pattern.permute.xlu0 1
  %729 = vperm.xlu0 %728, %v442
  %v730 = vpop.permute.xlu0 %729
  %732 = vset.pattern.permute.xlu0 1
  %733 = vperm.xlu0 %732, %v446
  %v734 = vpop.permute.xlu0 %733
  %736 = vset.pattern.permute.xlu0 1
  %737 = vperm.xlu0 %736, %v450
  %v738 = vpop.permute.xlu0 %737
  %740 = vset.pattern.permute.xlu0 1
  %741 = vperm.xlu0 %740, %v454
  %v742 = vpop.permute.xlu0 %741
  %744 = vset.pattern.permute.xlu0 1
  %745 = vperm.xlu0 %744, %v458
  %v746 = vpop.permute.xlu0 %745
  %748 = vset.pattern.permute.xlu0 1
  %749 = vperm.xlu0 %748, %v462
  %v750 = vpop.permute.xlu0 %749
  %752 = vset.pattern.permute.xlu0 1
  %753 = vperm.xlu0 %752, %v466
  %v754 = vpop.permute.xlu0 %753
  %756 = vset.pattern.permute.xlu0 1
  %757 = vperm.xlu0 %756, %v470
  %v758 = vpop.permute.xlu0 %757
  %760 = vset.pattern.permute.xlu0 1
  %761 = vperm.xlu0 %760, %v474
  %v762 = vpop.permute.xlu0 %761
  %764 = vset.pattern.permute.xlu0 1
  %765 = vperm.xlu0 %764, %v478
  %v766 = vpop.permute.xlu0 %765
  %768 = vset.pattern.permute.xlu0 1
  %769 = vperm.xlu0 %768, %v482
  %v770 = vpop.permute.xlu0 %769
  %772 = vset.pattern.permute.xlu0 1
  %773 = vperm.xlu0 %772, %v486
  %v774 = vpop.permute.xlu0 %773
  %776 = vset.pattern.permute.xlu0 1
  %777 = vperm.xlu0 %776, %v490
  %v778 = vpop.permute.xlu0 %777
  %780 = vset.pattern.permute.xlu0 1
  %781 = vperm.xlu0 %780, %v494
  %v782 = vpop.permute.xlu0 %781
  %784 = vset.pattern.permute.xlu0 1
  %785 = vperm.xlu0 %784, %v498
  %v786 = vpop.permute.xlu0 %785
  %788 = vset.pattern.permute.xlu0 1
  %789 = vperm.xlu0 %788, %v502
  %v790 = vpop.permute.xlu0 %789
  %792 = vset.pattern.permute.xlu0 1
  %793 = vperm.xlu0 %792, %v506
  %v794 = vpop.permute.xlu0 %793
  %796 = vset.pattern.permute.xlu0 1
  %797 = vperm.xlu0 %796, %v510
  %v798 = vpop.permute.xlu0 %797
  %800 = vset.pattern.permute.xlu0 1
  %801 = vperm.xlu0 %800, %v514
  %v802 = vpop.permute.xlu0 %801
  %804 = vset.pattern.permute.xlu0 1
  %805 = vperm.xlu0 %804, %v518
  %v806 = vpop.permute.xlu0 %805
  %808 = vset.pattern.permute.xlu0 1
  %809 = vperm.xlu0 %808, %v522
  %v810 = vpop.permute.xlu0 %809
  %812 = vset.pattern.permute.xlu0 1
  %813 = vperm.xlu0 %812, %v526
  %v814 = vpop.permute.xlu0 %813
  %816 = vset.pattern.permute.xlu0 1
  %817 = vperm.xlu0 %816, %v530
  %v818 = vpop.permute.xlu0 %817
  %820 = vset.pattern.permute.xlu0 1
  %821 = vperm.xlu0 %820, %v534
  %v822 = vpop.permute.xlu0 %821
  %824 = vset.pattern.permute.xlu0 1
  %825 = vperm.xlu0 %824, %v538
  %v826 = vpop.permute.xlu0 %825
  %828 = vset.pattern.permute.xlu0 1
  %829 = vperm.xlu0 %828, %v542
  %v830 = vpop.permute.xlu0 %829
  %832 = vset.pattern.permute.xlu0 1
  %833 = vperm.xlu0 %832, %v546
  %v834 = vpop.permute.xlu0 %833
  %836 = vset.pattern.permute.xlu0 1
  %837 = vperm.xlu0 %836, %v550
  %v838 = vpop.permute.xlu0 %837
  %v840 = vmul.f32 %v711, %v714
  %v841 = vmul.f32 %v711, %v718
  %v842 = vmul.f32 %v711, %v722
  %v843 = vmul.f32 %v711, %v726
  %v844 = vmul.f32 %v711, %v730
  %v845 = vmul.f32 %v711, %v734
  %v846 = vmul.f32 %v711, %v738
  %v847 = vmul.f32 %v711, %v742
  %v848 = vmul.f32 %v711, %v746
  %v849 = vmul.f32 %v711, %v750
  %v850 = vmul.f32 %v711, %v754
  %v851 = vmul.f32 %v711, %v758
  %v852 = vmul.f32 %v711, %v762
  %v853 = vmul.f32 %v711, %v766
  %v854 = vmul.f32 %v711, %v770
  %v855 = vmul.f32 %v711, %v774
  %v856 = vmul.f32 %v711, %v778
  %v857 = vmul.f32 %v711, %v782
  %v858 = vmul.f32 %v711, %v786
  %v859 = vmul.f32 %v711, %v790
  %v860 = vmul.f32 %v711, %v794
  %v861 = vmul.f32 %v711, %v798
  %v862 = vmul.f32 %v711, %v802
  %v863 = vmul.f32 %v711, %v806
  %v864 = vmul.f32 %v711, %v810
  %v865 = vmul.f32 %v711, %v814
  %v866 = vmul.f32 %v711, %v818
  %v867 = vmul.f32 %v711, %v822
  %v868 = vmul.f32 %v711, %v826
  %v869 = vmul.f32 %v711, %v830
  %v870 = vmul.f32 %v711, %v834
  %v871 = vmul.f32 %v711, %v838
  %904 = vrot.lane.b32.xlu0 %v840, 127
  %v905 = vpop.permute.xlu0 %904
  %906 = vrot.lane.b32.xlu0 %v841, 127
  %v907 = vpop.permute.xlu0 %906
  %908 = vrot.lane.b32.xlu0 %v842, 127
  %v909 = vpop.permute.xlu0 %908
  %910 = vrot.lane.b32.xlu0 %v843, 127
  %v911 = vpop.permute.xlu0 %910
  %912 = vrot.lane.b32.xlu0 %v844, 127
  %v913 = vpop.permute.xlu0 %912
  %914 = vrot.lane.b32.xlu0 %v845, 127
  %v915 = vpop.permute.xlu0 %914
  %916 = vrot.lane.b32.xlu0 %v846, 127
  %v917 = vpop.permute.xlu0 %916
  %918 = vrot.lane.b32.xlu0 %v847, 127
  %v919 = vpop.permute.xlu0 %918
  %920 = vrot.lane.b32.xlu0 %v848, 127
  %v921 = vpop.permute.xlu0 %920
  %922 = vrot.lane.b32.xlu0 %v849, 127
  %v923 = vpop.permute.xlu0 %922
  %924 = vrot.lane.b32.xlu0 %v850, 127
  %v925 = vpop.permute.xlu0 %924
  %926 = vrot.lane.b32.xlu0 %v851, 127
  %v927 = vpop.permute.xlu0 %926
  %928 = vrot.lane.b32.xlu0 %v852, 127
  %v929 = vpop.permute.xlu0 %928
  %930 = vrot.lane.b32.xlu0 %v853, 127
  %v931 = vpop.permute.xlu0 %930
  %932 = vrot.lane.b32.xlu0 %v854, 127
  %v933 = vpop.permute.xlu0 %932
  %934 = vrot.lane.b32.xlu0 %v855, 127
  %v935 = vpop.permute.xlu0 %934
  %936 = vrot.lane.b32.xlu0 %v856, 127
  %v937 = vpop.permute.xlu0 %936
  %938 = vrot.lane.b32.xlu0 %v857, 127
  %v939 = vpop.permute.xlu0 %938
  %940 = vrot.lane.b32.xlu0 %v858, 127
  %v941 = vpop.permute.xlu0 %940
  %942 = vrot.lane.b32.xlu0 %v859, 127
  %v943 = vpop.permute.xlu0 %942
  %944 = vrot.lane.b32.xlu0 %v860, 127
  %v945 = vpop.permute.xlu0 %944
  %946 = vrot.lane.b32.xlu0 %v861, 127
  %v947 = vpop.permute.xlu0 %946
  %948 = vrot.lane.b32.xlu0 %v862, 127
  %v949 = vpop.permute.xlu0 %948
  %950 = vrot.lane.b32.xlu0 %v863, 127
  %v951 = vpop.permute.xlu0 %950
  %952 = vrot.lane.b32.xlu0 %v864, 127
  %v953 = vpop.permute.xlu0 %952
  %954 = vrot.lane.b32.xlu0 %v865, 127
  %v955 = vpop.permute.xlu0 %954
  %956 = vrot.lane.b32.xlu0 %v866, 127
  %v957 = vpop.permute.xlu0 %956
  %958 = vrot.lane.b32.xlu0 %v867, 127
  %v959 = vpop.permute.xlu0 %958
  %960 = vrot.lane.b32.xlu0 %v868, 127
  %v961 = vpop.permute.xlu0 %960
  %962 = vrot.lane.b32.xlu0 %v869, 127
  %v963 = vpop.permute.xlu0 %962
  %964 = vrot.lane.b32.xlu0 %v870, 127
  %v965 = vpop.permute.xlu0 %964
  %966 = vrot.lane.b32.xlu0 %v871, 127
  %v967 = vpop.permute.xlu0 %966
  %v1000 = vadd.f32 %v679, %v905
  %v1001 = vadd.f32 %v680, %v907
  %v1002 = vadd.f32 %v681, %v909
  %v1003 = vadd.f32 %v682, %v911
  %v1004 = vadd.f32 %v683, %v913
  %v1005 = vadd.f32 %v684, %v915
  %v1006 = vadd.f32 %v685, %v917
  %v1007 = vadd.f32 %v686, %v919
  %v1008 = vadd.f32 %v687, %v921
  %v1009 = vadd.f32 %v688, %v923
  %v1010 = vadd.f32 %v689, %v925
  %v1011 = vadd.f32 %v690, %v927
  %v1012 = vadd.f32 %v691, %v929
  %v1013 = vadd.f32 %v692, %v931
  %v1014 = vadd.f32 %v693, %v933
  %v1015 = vadd.f32 %v694, %v935
  %v1016 = vadd.f32 %v695, %v937
  %v1017 = vadd.f32 %v696, %v939
  %v1018 = vadd.f32 %v697, %v941
  %v1019 = vadd.f32 %v698, %v943
  %v1020 = vadd.f32 %v699, %v945
  %v1021 = vadd.f32 %v700, %v947
  %v1022 = vadd.f32 %v701, %v949
  %v1023 = vadd.f32 %v702, %v951
  %v1024 = vadd.f32 %v703, %v953
  %v1025 = vadd.f32 %v704, %v955
  %v1026 = vadd.f32 %v705, %v957
  %v1027 = vadd.f32 %v706, %v959
  %v1028 = vadd.f32 %v707, %v961
  %v1029 = vadd.f32 %v708, %v963
  %v1030 = vadd.f32 %v709, %v965
  %v1031 = vadd.f32 %v710, %v967
  %v1032 = vld [vmem:[%s0] sm:$0x3]
  %1033 = vset.pattern.permute.xlu0 2
  %1034 = vperm.xlu0 %1033, %v426
  %v1035 = vpop.permute.xlu0 %1034
  %1037 = vset.pattern.permute.xlu0 2
  %1038 = vperm.xlu0 %1037, %v430
  %v1039 = vpop.permute.xlu0 %1038
  %1041 = vset.pattern.permute.xlu0 2
  %1042 = vperm.xlu0 %1041, %v434
  %v1043 = vpop.permute.xlu0 %1042
  %1045 = vset.pattern.permute.xlu0 2
  %1046 = vperm.xlu0 %1045, %v438
  %v1047 = vpop.permute.xlu0 %1046
  %1049 = vset.pattern.permute.xlu0 2
  %1050 = vperm.xlu0 %1049, %v442
  %v1051 = vpop.permute.xlu0 %1050
  %1053 = vset.pattern.permute.xlu0 2
  %1054 = vperm.xlu0 %1053, %v446
  %v1055 = vpop.permute.xlu0 %1054
  %1057 = vset.pattern.permute.xlu0 2
  %1058 = vperm.xlu0 %1057, %v450
  %v1059 = vpop.permute.xlu0 %1058
  %1061 = vset.pattern.permute.xlu0 2
  %1062 = vperm.xlu0 %1061, %v454
  %v1063 = vpop.permute.xlu0 %1062
  %1065 = vset.pattern.permute.xlu0 2
  %1066 = vperm.xlu0 %1065, %v458
  %v1067 = vpop.permute.xlu0 %1066
  %1069 = vset.pattern.permute.xlu0 2
  %1070 = vperm.xlu0 %1069, %v462
  %v1071 = vpop.permute.xlu0 %1070
  %1073 = vset.pattern.permute.xlu0 2
  %1074 = vperm.xlu0 %1073, %v466
  %v1075 = vpop.permute.xlu0 %1074
  %1077 = vset.pattern.permute.xlu0 2
  %1078 = vperm.xlu0 %1077, %v470
  %v1079 = vpop.permute.xlu0 %1078
  %1081 = vset.pattern.permute.xlu0 2
  %1082 = vperm.xlu0 %1081, %v474
  %v1083 = vpop.permute.xlu0 %1082
  %1085 = vset.pattern.permute.xlu0 2
  %1086 = vperm.xlu0 %1085, %v478
  %v1087 = vpop.permute.xlu0 %1086
  %1089 = vset.pattern.permute.xlu0 2
  %1090 = vperm.xlu0 %1089, %v482
  %v1091 = vpop.permute.xlu0 %1090
  %1093 = vset.pattern.permute.xlu0 2
  %1094 = vperm.xlu0 %1093, %v486
  %v1095 = vpop.permute.xlu0 %1094
  %1097 = vset.pattern.permute.xlu0 2
  %1098 = vperm.xlu0 %1097, %v490
  %v1099 = vpop.permute.xlu0 %1098
  %1101 = vset.pattern.permute.xlu0 2
  %1102 = vperm.xlu0 %1101, %v494
  %v1103 = vpop.permute.xlu0 %1102
  %1105 = vset.pattern.permute.xlu0 2
  %1106 = vperm.xlu0 %1105, %v498
  %v1107 = vpop.permute.xlu0 %1106
  %1109 = vset.pattern.permute.xlu0 2
  %1110 = vperm.xlu0 %1109, %v502
  %v1111 = vpop.permute.xlu0 %1110
  %1113 = vset.pattern.permute.xlu0 2
  %1114 = vperm.xlu0 %1113, %v506
  %v1115 = vpop.permute.xlu0 %1114
  %1117 = vset.pattern.permute.xlu0 2
  %1118 = vperm.xlu0 %1117, %v510
  %v1119 = vpop.permute.xlu0 %1118
  %1121 = vset.pattern.permute.xlu0 2
  %1122 = vperm.xlu0 %1121, %v514
  %v1123 = vpop.permute.xlu0 %1122
  %1125 = vset.pattern.permute.xlu0 2
  %1126 = vperm.xlu0 %1125, %v518
  %v1127 = vpop.permute.xlu0 %1126
  %1129 = vset.pattern.permute.xlu0 2
  %1130 = vperm.xlu0 %1129, %v522
  %v1131 = vpop.permute.xlu0 %1130
  %1133 = vset.pattern.permute.xlu0 2
  %1134 = vperm.xlu0 %1133, %v526
  %v1135 = vpop.permute.xlu0 %1134
  %1137 = vset.pattern.permute.xlu0 2
  %1138 = vperm.xlu0 %1137, %v530
  %v1139 = vpop.permute.xlu0 %1138
  %1141 = vset.pattern.permute.xlu0 2
  %1142 = vperm.xlu0 %1141, %v534
  %v1143 = vpop.permute.xlu0 %1142
  %1145 = vset.pattern.permute.xlu0 2
  %1146 = vperm.xlu0 %1145, %v538
  %v1147 = vpop.permute.xlu0 %1146
  %1149 = vset.pattern.permute.xlu0 2
  %1150 = vperm.xlu0 %1149, %v542
  %v1151 = vpop.permute.xlu0 %1150
  %1153 = vset.pattern.permute.xlu0 2
  %1154 = vperm.xlu0 %1153, %v546
  %v1155 = vpop.permute.xlu0 %1154
  %1157 = vset.pattern.permute.xlu0 2
  %1158 = vperm.xlu0 %1157, %v550
  %v1159 = vpop.permute.xlu0 %1158
  %v1161 = vmul.f32 %v1032, %v1035
  %v1162 = vmul.f32 %v1032, %v1039
  %v1163 = vmul.f32 %v1032, %v1043
  %v1164 = vmul.f32 %v1032, %v1047
  %v1165 = vmul.f32 %v1032, %v1051
  %v1166 = vmul.f32 %v1032, %v1055
  %v1167 = vmul.f32 %v1032, %v1059
  %v1168 = vmul.f32 %v1032, %v1063
  %v1169 = vmul.f32 %v1032, %v1067
  %v1170 = vmul.f32 %v1032, %v1071
  %v1171 = vmul.f32 %v1032, %v1075
  %v1172 = vmul.f32 %v1032, %v1079
  %v1173 = vmul.f32 %v1032, %v1083
  %v1174 = vmul.f32 %v1032, %v1087
  %v1175 = vmul.f32 %v1032, %v1091
  %v1176 = vmul.f32 %v1032, %v1095
  %v1177 = vmul.f32 %v1032, %v1099
  %v1178 = vmul.f32 %v1032, %v1103
  %v1179 = vmul.f32 %v1032, %v1107
  %v1180 = vmul.f32 %v1032, %v1111
  %v1181 = vmul.f32 %v1032, %v1115
  %v1182 = vmul.f32 %v1032, %v1119
  %v1183 = vmul.f32 %v1032, %v1123
  %v1184 = vmul.f32 %v1032, %v1127
  %v1185 = vmul.f32 %v1032, %v1131
  %v1186 = vmul.f32 %v1032, %v1135
  %v1187 = vmul.f32 %v1032, %v1139
  %v1188 = vmul.f32 %v1032, %v1143
  %v1189 = vmul.f32 %v1032, %v1147
  %v1190 = vmul.f32 %v1032, %v1151
  %v1191 = vmul.f32 %v1032, %v1155
  %v1192 = vmul.f32 %v1032, %v1159
  %1225 = vrot.lane.b32.xlu0 %v1161, 126
  %v1226 = vpop.permute.xlu0 %1225
  %1227 = vrot.lane.b32.xlu0 %v1162, 126
  %v1228 = vpop.permute.xlu0 %1227
  %1229 = vrot.lane.b32.xlu0 %v1163, 126
  %v1230 = vpop.permute.xlu0 %1229
  %1231 = vrot.lane.b32.xlu0 %v1164, 126
  %v1232 = vpop.permute.xlu0 %1231
  %1233 = vrot.lane.b32.xlu0 %v1165, 126
  %v1234 = vpop.permute.xlu0 %1233
  %1235 = vrot.lane.b32.xlu0 %v1166, 126
  %v1236 = vpop.permute.xlu0 %1235
  %1237 = vrot.lane.b32.xlu0 %v1167, 126
  %v1238 = vpop.permute.xlu0 %1237
  %1239 = vrot.lane.b32.xlu0 %v1168, 126
  %v1240 = vpop.permute.xlu0 %1239
  %1241 = vrot.lane.b32.xlu0 %v1169, 126
  %v1242 = vpop.permute.xlu0 %1241
  %1243 = vrot.lane.b32.xlu0 %v1170, 126
  %v1244 = vpop.permute.xlu0 %1243
  %1245 = vrot.lane.b32.xlu0 %v1171, 126
  %v1246 = vpop.permute.xlu0 %1245
  %1247 = vrot.lane.b32.xlu0 %v1172, 126
  %v1248 = vpop.permute.xlu0 %1247
  %1249 = vrot.lane.b32.xlu0 %v1173, 126
  %v1250 = vpop.permute.xlu0 %1249
  %1251 = vrot.lane.b32.xlu0 %v1174, 126
  %v1252 = vpop.permute.xlu0 %1251
  %1253 = vrot.lane.b32.xlu0 %v1175, 126
  %v1254 = vpop.permute.xlu0 %1253
  %1255 = vrot.lane.b32.xlu0 %v1176, 126
  %v1256 = vpop.permute.xlu0 %1255
  %1257 = vrot.lane.b32.xlu0 %v1177, 126
  %v1258 = vpop.permute.xlu0 %1257
  %1259 = vrot.lane.b32.xlu0 %v1178, 126
  %v1260 = vpop.permute.xlu0 %1259
  %1261 = vrot.lane.b32.xlu0 %v1179, 126
  %v1262 = vpop.permute.xlu0 %1261
  %1263 = vrot.lane.b32.xlu0 %v1180, 126
  %v1264 = vpop.permute.xlu0 %1263
  %1265 = vrot.lane.b32.xlu0 %v1181, 126
  %v1266 = vpop.permute.xlu0 %1265
  %1267 = vrot.lane.b32.xlu0 %v1182, 126
  %v1268 = vpop.permute.xlu0 %1267
  %1269 = vrot.lane.b32.xlu0 %v1183, 126
  %v1270 = vpop.permute.xlu0 %1269
  %1271 = vrot.lane.b32.xlu0 %v1184, 126
  %v1272 = vpop.permute.xlu0 %1271
  %1273 = vrot.lane.b32.xlu0 %v1185, 126
  %v1274 = vpop.permute.xlu0 %1273
  %1275 = vrot.lane.b32.xlu0 %v1186, 126
  %v1276 = vpop.permute.xlu0 %1275
  %1277 = vrot.lane.b32.xlu0 %v1187, 126
  %v1278 = vpop.permute.xlu0 %1277
  %1279 = vrot.lane.b32.xlu0 %v1188, 126
  %v1280 = vpop.permute.xlu0 %1279
  %1281 = vrot.lane.b32.xlu0 %v1189, 126
  %v1282 = vpop.permute.xlu0 %1281
  %1283 = vrot.lane.b32.xlu0 %v1190, 126
  %v1284 = vpop.permute.xlu0 %1283
  %1285 = vrot.lane.b32.xlu0 %v1191, 126
  %v1286 = vpop.permute.xlu0 %1285
  %1287 = vrot.lane.b32.xlu0 %v1192, 126
  %v1288 = vpop.permute.xlu0 %1287
  %v1321 = vadd.f32 %v1000, %v1226
  %v1322 = vadd.f32 %v1001, %v1228
  %v1323 = vadd.f32 %v1002, %v1230
  %v1324 = vadd.f32 %v1003, %v1232
  %v1325 = vadd.f32 %v1004, %v1234
  %v1326 = vadd.f32 %v1005, %v1236
  %v1327 = vadd.f32 %v1006, %v1238
  %v1328 = vadd.f32 %v1007, %v1240
  %v1329 = vadd.f32 %v1008, %v1242
  %v1330 = vadd.f32 %v1009, %v1244
  %v1331 = vadd.f32 %v1010, %v1246
  %v1332 = vadd.f32 %v1011, %v1248
  %v1333 = vadd.f32 %v1012, %v1250
  %v1334 = vadd.f32 %v1013, %v1252
  %v1335 = vadd.f32 %v1014, %v1254
  %v1336 = vadd.f32 %v1015, %v1256
  %v1337 = vadd.f32 %v1016, %v1258
  %v1338 = vadd.f32 %v1017, %v1260
  %v1339 = vadd.f32 %v1018, %v1262
  %v1340 = vadd.f32 %v1019, %v1264
  %v1341 = vadd.f32 %v1020, %v1266
  %v1342 = vadd.f32 %v1021, %v1268
  %v1343 = vadd.f32 %v1022, %v1270
  %v1344 = vadd.f32 %v1023, %v1272
  %v1345 = vadd.f32 %v1024, %v1274
  %v1346 = vadd.f32 %v1025, %v1276
  %v1347 = vadd.f32 %v1026, %v1278
  %v1348 = vadd.f32 %v1027, %v1280
  %v1349 = vadd.f32 %v1028, %v1282
  %v1350 = vadd.f32 %v1029, %v1284
  %v1351 = vadd.f32 %v1030, %v1286
  %v1352 = vadd.f32 %v1031, %v1288
  %v1353 = vlaneseq
  %v1354 = vshrl.u32 %v1353, 7
  %v1355 = vsub.s32 0, %v1354
  %v1356 = vrot.slane %v49, %v1355
  %v1357 = vlaneseq
  %v1358 = vshrl.u32 %v1357, 7
  %v1359 = vsub.s32 0, %v1358
  %v1360 = vrot.slane %v63, %v1359
  %v1361 = vlaneseq
  %v1362 = vshrl.u32 %v1361, 7
  %v1363 = vsub.s32 0, %v1362
  %v1364 = vrot.slane %v71, %v1363
  %v1365 = vlaneseq
  %v1366 = vshrl.u32 %v1365, 7
  %v1367 = vsub.s32 0, %v1366
  %v1368 = vrot.slane %v73, %v1367
  %v1369 = vlaneseq
  %v1370 = vshrl.u32 %v1369, 7
  %v1371 = vsub.s32 0, %v1370
  %v1372 = vrot.slane %v56, %v1371
  %v1373 = vlaneseq
  %v1374 = vshrl.u32 %v1373, 7
  %v1375 = vsub.s32 0, %v1374
  %v1376 = vrot.slane %v70, %v1375
  %v1377 = vlaneseq
  %v1378 = vshrl.u32 %v1377, 7
  %v1379 = vsub.s32 0, %v1378
  %v1380 = vrot.slane %v72, %v1379
  %v1381 = vlaneseq
  %v1382 = vshrl.u32 %v1381, 7
  %v1383 = vsub.s32 0, %v1382
  %v1384 = vrot.slane %v74, %v1383
  %v1385 = vlaneseq
  %v1386 = vshrl.u32 %v1385, 7
  %v1387 = vsub.s32 0, %v1386
  %v1388 = vrot.slane %v98, %v1387
  %v1389 = vlaneseq
  %v1390 = vshrl.u32 %v1389, 7
  %v1391 = vsub.s32 0, %v1390
  %v1392 = vrot.slane %v112, %v1391
  %v1393 = vlaneseq
  %v1394 = vshrl.u32 %v1393, 7
  %v1395 = vsub.s32 0, %v1394
  %v1396 = vrot.slane %v120, %v1395
  %v1397 = vlaneseq
  %v1398 = vshrl.u32 %v1397, 7
  %v1399 = vsub.s32 0, %v1398
  %v1400 = vrot.slane %v122, %v1399
  %v1401 = vlaneseq
  %v1402 = vshrl.u32 %v1401, 7
  %v1403 = vsub.s32 0, %v1402
  %v1404 = vrot.slane %v105, %v1403
  %v1405 = vlaneseq
  %v1406 = vshrl.u32 %v1405, 7
  %v1407 = vsub.s32 0, %v1406
  %v1408 = vrot.slane %v119, %v1407
  %v1409 = vlaneseq
  %v1410 = vshrl.u32 %v1409, 7
  %v1411 = vsub.s32 0, %v1410
  %v1412 = vrot.slane %v121, %v1411
  %v1413 = vlaneseq
  %v1414 = vshrl.u32 %v1413, 7
  %v1415 = vsub.s32 0, %v1414
  %v1416 = vrot.slane %v123, %v1415
  %v1417 = vlaneseq
  %v1418 = vshrl.u32 %v1417, 7
  %v1419 = vsub.s32 0, %v1418
  %v1420 = vrot.slane %v147, %v1419
  %v1421 = vlaneseq
  %v1422 = vshrl.u32 %v1421, 7
  %v1423 = vsub.s32 0, %v1422
  %v1424 = vrot.slane %v161, %v1423
  %v1425 = vlaneseq
  %v1426 = vshrl.u32 %v1425, 7
  %v1427 = vsub.s32 0, %v1426
  %v1428 = vrot.slane %v169, %v1427
  %v1429 = vlaneseq
  %v1430 = vshrl.u32 %v1429, 7
  %v1431 = vsub.s32 0, %v1430
  %v1432 = vrot.slane %v171, %v1431
  %v1433 = vlaneseq
  %v1434 = vshrl.u32 %v1433, 7
  %v1435 = vsub.s32 0, %v1434
  %v1436 = vrot.slane %v154, %v1435
  %v1437 = vlaneseq
  %v1438 = vshrl.u32 %v1437, 7
  %v1439 = vsub.s32 0, %v1438
  %v1440 = vrot.slane %v168, %v1439
  %v1441 = vlaneseq
  %v1442 = vshrl.u32 %v1441, 7
  %v1443 = vsub.s32 0, %v1442
  %v1444 = vrot.slane %v170, %v1443
  %v1445 = vlaneseq
  %v1446 = vshrl.u32 %v1445, 7
  %v1447 = vsub.s32 0, %v1446
  %v1448 = vrot.slane %v172, %v1447
  %v1449 = vlaneseq
  %v1450 = vshrl.u32 %v1449, 7
  %v1451 = vsub.s32 0, %v1450
  %v1452 = vrot.slane %v196, %v1451
  %v1453 = vlaneseq
  %v1454 = vshrl.u32 %v1453, 7
  %v1455 = vsub.s32 0, %v1454
  %v1456 = vrot.slane %v210, %v1455
  %v1457 = vlaneseq
  %v1458 = vshrl.u32 %v1457, 7
  %v1459 = vsub.s32 0, %v1458
  %v1460 = vrot.slane %v218, %v1459
  %v1461 = vlaneseq
  %v1462 = vshrl.u32 %v1461, 7
  %v1463 = vsub.s32 0, %v1462
  %v1464 = vrot.slane %v220, %v1463
  %v1465 = vlaneseq
  %v1466 = vshrl.u32 %v1465, 7
  %v1467 = vsub.s32 0, %v1466
  %v1468 = vrot.slane %v203, %v1467
  %v1469 = vlaneseq
  %v1470 = vshrl.u32 %v1469, 7
  %v1471 = vsub.s32 0, %v1470
  %v1472 = vrot.slane %v217, %v1471
  %v1473 = vlaneseq
  %v1474 = vshrl.u32 %v1473, 7
  %v1475 = vsub.s32 0, %v1474
  %v1476 = vrot.slane %v219, %v1475
  %v1477 = vlaneseq
  %v1478 = vshrl.u32 %v1477, 7
  %v1479 = vsub.s32 0, %v1478
  %v1480 = vrot.slane %v221, %v1479
  %1481 = vset.pattern.permute.xlu0 0
  %1482 = vperm.xlu0 %1481, %v1356
  %v1483 = vpop.permute.xlu0 %1482
  %1485 = vset.pattern.permute.xlu0 0
  %1486 = vperm.xlu0 %1485, %v1360
  %v1487 = vpop.permute.xlu0 %1486
  %1489 = vset.pattern.permute.xlu0 0
  %1490 = vperm.xlu0 %1489, %v1364
  %v1491 = vpop.permute.xlu0 %1490
  %1493 = vset.pattern.permute.xlu0 0
  %1494 = vperm.xlu0 %1493, %v1368
  %v1495 = vpop.permute.xlu0 %1494
  %1497 = vset.pattern.permute.xlu0 0
  %1498 = vperm.xlu0 %1497, %v1372
  %v1499 = vpop.permute.xlu0 %1498
  %1501 = vset.pattern.permute.xlu0 0
  %1502 = vperm.xlu0 %1501, %v1376
  %v1503 = vpop.permute.xlu0 %1502
  %1505 = vset.pattern.permute.xlu0 0
  %1506 = vperm.xlu0 %1505, %v1380
  %v1507 = vpop.permute.xlu0 %1506
  %1509 = vset.pattern.permute.xlu0 0
  %1510 = vperm.xlu0 %1509, %v1384
  %v1511 = vpop.permute.xlu0 %1510
  %1513 = vset.pattern.permute.xlu0 0
  %1514 = vperm.xlu0 %1513, %v1388
  %v1515 = vpop.permute.xlu0 %1514
  %1517 = vset.pattern.permute.xlu0 0
  %1518 = vperm.xlu0 %1517, %v1392
  %v1519 = vpop.permute.xlu0 %1518
  %1521 = vset.pattern.permute.xlu0 0
  %1522 = vperm.xlu0 %1521, %v1396
  %v1523 = vpop.permute.xlu0 %1522
  %1525 = vset.pattern.permute.xlu0 0
  %1526 = vperm.xlu0 %1525, %v1400
  %v1527 = vpop.permute.xlu0 %1526
  %1529 = vset.pattern.permute.xlu0 0
  %1530 = vperm.xlu0 %1529, %v1404
  %v1531 = vpop.permute.xlu0 %1530
  %1533 = vset.pattern.permute.xlu0 0
  %1534 = vperm.xlu0 %1533, %v1408
  %v1535 = vpop.permute.xlu0 %1534
  %1537 = vset.pattern.permute.xlu0 0
  %1538 = vperm.xlu0 %1537, %v1412
  %v1539 = vpop.permute.xlu0 %1538
  %1541 = vset.pattern.permute.xlu0 0
  %1542 = vperm.xlu0 %1541, %v1416
  %v1543 = vpop.permute.xlu0 %1542
  %1545 = vset.pattern.permute.xlu0 0
  %1546 = vperm.xlu0 %1545, %v1420
  %v1547 = vpop.permute.xlu0 %1546
  %1549 = vset.pattern.permute.xlu0 0
  %1550 = vperm.xlu0 %1549, %v1424
  %v1551 = vpop.permute.xlu0 %1550
  %1553 = vset.pattern.permute.xlu0 0
  %1554 = vperm.xlu0 %1553, %v1428
  %v1555 = vpop.permute.xlu0 %1554
  %1557 = vset.pattern.permute.xlu0 0
  %1558 = vperm.xlu0 %1557, %v1432
  %v1559 = vpop.permute.xlu0 %1558
  %1561 = vset.pattern.permute.xlu0 0
  %1562 = vperm.xlu0 %1561, %v1436
  %v1563 = vpop.permute.xlu0 %1562
  %1565 = vset.pattern.permute.xlu0 0
  %1566 = vperm.xlu0 %1565, %v1440
  %v1567 = vpop.permute.xlu0 %1566
  %1569 = vset.pattern.permute.xlu0 0
  %1570 = vperm.xlu0 %1569, %v1444
  %v1571 = vpop.permute.xlu0 %1570
  %1573 = vset.pattern.permute.xlu0 0
  %1574 = vperm.xlu0 %1573, %v1448
  %v1575 = vpop.permute.xlu0 %1574
  %1577 = vset.pattern.permute.xlu0 0
  %1578 = vperm.xlu0 %1577, %v1452
  %v1579 = vpop.permute.xlu0 %1578
  %1581 = vset.pattern.permute.xlu0 0
  %1582 = vperm.xlu0 %1581, %v1456
  %v1583 = vpop.permute.xlu0 %1582
  %1585 = vset.pattern.permute.xlu0 0
  %1586 = vperm.xlu0 %1585, %v1460
  %v1587 = vpop.permute.xlu0 %1586
  %1589 = vset.pattern.permute.xlu0 0
  %1590 = vperm.xlu0 %1589, %v1464
  %v1591 = vpop.permute.xlu0 %1590
  %1593 = vset.pattern.permute.xlu0 0
  %1594 = vperm.xlu0 %1593, %v1468
  %v1595 = vpop.permute.xlu0 %1594
  %1597 = vset.pattern.permute.xlu0 0
  %1598 = vperm.xlu0 %1597, %v1472
  %v1599 = vpop.permute.xlu0 %1598
  %1601 = vset.pattern.permute.xlu0 0
  %1602 = vperm.xlu0 %1601, %v1476
  %v1603 = vpop.permute.xlu0 %1602
  %1605 = vset.pattern.permute.xlu0 0
  %1606 = vperm.xlu0 %1605, %v1480
  %v1607 = vpop.permute.xlu0 %1606
  %v1609 = vadd.f32 %v1321, %v1483
  %v1610 = vadd.f32 %v1322, %v1487
  %v1611 = vadd.f32 %v1323, %v1491
  %v1612 = vadd.f32 %v1324, %v1495
  %v1613 = vadd.f32 %v1325, %v1499
  %v1614 = vadd.f32 %v1326, %v1503
  %v1615 = vadd.f32 %v1327, %v1507
  %v1616 = vadd.f32 %v1328, %v1511
  %v1617 = vadd.f32 %v1329, %v1515
  %v1618 = vadd.f32 %v1330, %v1519
  %v1619 = vadd.f32 %v1331, %v1523
  %v1620 = vadd.f32 %v1332, %v1527
  %v1621 = vadd.f32 %v1333, %v1531
  %v1622 = vadd.f32 %v1334, %v1535
  %v1623 = vadd.f32 %v1335, %v1539
  %v1624 = vadd.f32 %v1336, %v1543
  %v1625 = vadd.f32 %v1337, %v1547
  %v1626 = vadd.f32 %v1338, %v1551
  %v1627 = vadd.f32 %v1339, %v1555
  %v1628 = vadd.f32 %v1340, %v1559
  %v1629 = vadd.f32 %v1341, %v1563
  %v1630 = vadd.f32 %v1342, %v1567
  %v1631 = vadd.f32 %v1343, %v1571
  %v1632 = vadd.f32 %v1344, %v1575
  %v1633 = vadd.f32 %v1345, %v1579
  %v1634 = vadd.f32 %v1346, %v1583
  %v1635 = vadd.f32 %v1347, %v1587
  %v1636 = vadd.f32 %v1348, %v1591
  %v1637 = vadd.f32 %v1349, %v1595
  %v1638 = vadd.f32 %v1350, %v1599
  %v1639 = vadd.f32 %v1351, %v1603
  %v1640 = vadd.f32 %v1352, %v1607
  %v1641 = vmax.f32 %v1609, 0.0
  %v1642 = vmax.f32 %v1610, 0.0
  %v1643 = vmax.f32 %v1611, 0.0
  %v1644 = vmax.f32 %v1612, 0.0
  %v1645 = vmax.f32 %v1613, 0.0
  %v1646 = vmax.f32 %v1614, 0.0
  %v1647 = vmax.f32 %v1615, 0.0
  %v1648 = vmax.f32 %v1616, 0.0
  %v1649 = vmax.f32 %v1617, 0.0
  %v1650 = vmax.f32 %v1618, 0.0
  %v1651 = vmax.f32 %v1619, 0.0
  %v1652 = vmax.f32 %v1620, 0.0
  %v1653 = vmax.f32 %v1621, 0.0
  %v1654 = vmax.f32 %v1622, 0.0
  %v1655 = vmax.f32 %v1623, 0.0
  %v1656 = vmax.f32 %v1624, 0.0
  %v1657 = vmax.f32 %v1625, 0.0
  %v1658 = vmax.f32 %v1626, 0.0
  %v1659 = vmax.f32 %v1627, 0.0
  %v1660 = vmax.f32 %v1628, 0.0
  %v1661 = vmax.f32 %v1629, 0.0
  %v1662 = vmax.f32 %v1630, 0.0
  %v1663 = vmax.f32 %v1631, 0.0
  %v1664 = vmax.f32 %v1632, 0.0
  %v1665 = vmax.f32 %v1633, 0.0
  %v1666 = vmax.f32 %v1634, 0.0
  %v1667 = vmax.f32 %v1635, 0.0
  %v1668 = vmax.f32 %v1636, 0.0
  %v1669 = vmax.f32 %v1637, 0.0
  %v1670 = vmax.f32 %v1638, 0.0
  %v1671 = vmax.f32 %v1639, 0.0
  %v1672 = vmax.f32 %v1640, 0.0
  %vm1673 = vcmask 107520
  %v1674 = vsel %vm1673, %v1641, 0.0
  %1675 = vadd.xlane.f32.xlu0 %v1674
  %v1676 = vpop.xlane.xlu0 %1675
  %v1677 = vsel %vm1673, %v1642, 0.0
  %1678 = vadd.xlane.f32.xlu0 %v1677
  %v1679 = vpop.xlane.xlu0 %1678
  %v1680 = vsel %vm1673, %v1643, 0.0
  %1681 = vadd.xlane.f32.xlu0 %v1680
  %v1682 = vpop.xlane.xlu0 %1681
  %v1683 = vsel %vm1673, %v1644, 0.0
  %1684 = vadd.xlane.f32.xlu0 %v1683
  %v1685 = vpop.xlane.xlu0 %1684
  %v1686 = vsel %vm1673, %v1645, 0.0
  %1687 = vadd.xlane.f32.xlu0 %v1686
  %v1688 = vpop.xlane.xlu0 %1687
  %v1689 = vsel %vm1673, %v1646, 0.0
  %1690 = vadd.xlane.f32.xlu0 %v1689
  %v1691 = vpop.xlane.xlu0 %1690
  %v1692 = vsel %vm1673, %v1647, 0.0
  %1693 = vadd.xlane.f32.xlu0 %v1692
  %v1694 = vpop.xlane.xlu0 %1693
  %v1695 = vsel %vm1673, %v1648, 0.0
  %1696 = vadd.xlane.f32.xlu0 %v1695
  %v1697 = vpop.xlane.xlu0 %1696
  %v1698 = vsel %vm1673, %v1649, 0.0
  %1699 = vadd.xlane.f32.xlu0 %v1698
  %v1700 = vpop.xlane.xlu0 %1699
  %v1701 = vsel %vm1673, %v1650, 0.0
  %1702 = vadd.xlane.f32.xlu0 %v1701
  %v1703 = vpop.xlane.xlu0 %1702
  %v1704 = vsel %vm1673, %v1651, 0.0
  %1705 = vadd.xlane.f32.xlu0 %v1704
  %v1706 = vpop.xlane.xlu0 %1705
  %v1707 = vsel %vm1673, %v1652, 0.0
  %1708 = vadd.xlane.f32.xlu0 %v1707
  %v1709 = vpop.xlane.xlu0 %1708
  %v1710 = vsel %vm1673, %v1653, 0.0
  %1711 = vadd.xlane.f32.xlu0 %v1710
  %v1712 = vpop.xlane.xlu0 %1711
  %v1713 = vsel %vm1673, %v1654, 0.0
  %1714 = vadd.xlane.f32.xlu0 %v1713
  %v1715 = vpop.xlane.xlu0 %1714
  %v1716 = vsel %vm1673, %v1655, 0.0
  %1717 = vadd.xlane.f32.xlu0 %v1716
  %v1718 = vpop.xlane.xlu0 %1717
  %v1719 = vsel %vm1673, %v1656, 0.0
  %1720 = vadd.xlane.f32.xlu0 %v1719
  %v1721 = vpop.xlane.xlu0 %1720
  %v1722 = vsel %vm1673, %v1657, 0.0
  %1723 = vadd.xlane.f32.xlu0 %v1722
  %v1724 = vpop.xlane.xlu0 %1723
  %v1725 = vsel %vm1673, %v1658, 0.0
  %1726 = vadd.xlane.f32.xlu0 %v1725
  %v1727 = vpop.xlane.xlu0 %1726
  %v1728 = vsel %vm1673, %v1659, 0.0
  %1729 = vadd.xlane.f32.xlu0 %v1728
  %v1730 = vpop.xlane.xlu0 %1729
  %v1731 = vsel %vm1673, %v1660, 0.0
  %1732 = vadd.xlane.f32.xlu0 %v1731
  %v1733 = vpop.xlane.xlu0 %1732
  %v1734 = vsel %vm1673, %v1661, 0.0
  %1735 = vadd.xlane.f32.xlu0 %v1734
  %v1736 = vpop.xlane.xlu0 %1735
  %v1737 = vsel %vm1673, %v1662, 0.0
  %1738 = vadd.xlane.f32.xlu0 %v1737
  %v1739 = vpop.xlane.xlu0 %1738
  %v1740 = vsel %vm1673, %v1663, 0.0
  %1741 = vadd.xlane.f32.xlu0 %v1740
  %v1742 = vpop.xlane.xlu0 %1741
  %v1743 = vsel %vm1673, %v1664, 0.0
  %1744 = vadd.xlane.f32.xlu0 %v1743
  %v1745 = vpop.xlane.xlu0 %1744
  %v1746 = vsel %vm1673, %v1665, 0.0
  %1747 = vadd.xlane.f32.xlu0 %v1746
  %v1748 = vpop.xlane.xlu0 %1747
  %v1749 = vsel %vm1673, %v1666, 0.0
  %1750 = vadd.xlane.f32.xlu0 %v1749
  %v1751 = vpop.xlane.xlu0 %1750
  %v1752 = vsel %vm1673, %v1667, 0.0
  %1753 = vadd.xlane.f32.xlu0 %v1752
  %v1754 = vpop.xlane.xlu0 %1753
  %v1755 = vsel %vm1673, %v1668, 0.0
  %1756 = vadd.xlane.f32.xlu0 %v1755
  %v1757 = vpop.xlane.xlu0 %1756
  %v1758 = vsel %vm1673, %v1669, 0.0
  %1759 = vadd.xlane.f32.xlu0 %v1758
  %v1760 = vpop.xlane.xlu0 %1759
  %v1761 = vsel %vm1673, %v1670, 0.0
  %1762 = vadd.xlane.f32.xlu0 %v1761
  %v1763 = vpop.xlane.xlu0 %1762
  %v1764 = vsel %vm1673, %v1671, 0.0
  %1765 = vadd.xlane.f32.xlu0 %v1764
  %v1766 = vpop.xlane.xlu0 %1765
  %v1767 = vsel %vm1673, %v1672, 0.0
  %1768 = vadd.xlane.f32.xlu0 %v1767
  %v1769 = vpop.xlane.xlu0 %1768
  %v1770 = vadd.f32 %v1676, 0.0
  %v1771 = vadd.f32 %v1679, 0.0
  %v1772 = vadd.f32 %v1682, 0.0
  %v1773 = vadd.f32 %v1685, 0.0
  %v1774 = vadd.f32 %v1688, 0.0
  %v1775 = vadd.f32 %v1691, 0.0
  %v1776 = vadd.f32 %v1694, 0.0
  %v1777 = vadd.f32 %v1697, 0.0
  %v1778 = vadd.f32 %v1700, 0.0
  %v1779 = vadd.f32 %v1703, 0.0
  %v1780 = vadd.f32 %v1706, 0.0
  %v1781 = vadd.f32 %v1709, 0.0
  %v1782 = vadd.f32 %v1712, 0.0
  %v1783 = vadd.f32 %v1715, 0.0
  %v1784 = vadd.f32 %v1718, 0.0
  %v1785 = vadd.f32 %v1721, 0.0
  %v1786 = vadd.f32 %v1724, 0.0
  %v1787 = vadd.f32 %v1727, 0.0
  %v1788 = vadd.f32 %v1730, 0.0
  %v1789 = vadd.f32 %v1733, 0.0
  %v1790 = vadd.f32 %v1736, 0.0
  %v1791 = vadd.f32 %v1739, 0.0
  %v1792 = vadd.f32 %v1742, 0.0
  %v1793 = vadd.f32 %v1745, 0.0
  %v1794 = vadd.f32 %v1748, 0.0
  %v1795 = vadd.f32 %v1751, 0.0
  %v1796 = vadd.f32 %v1754, 0.0
  %v1797 = vadd.f32 %v1757, 0.0
  %v1798 = vadd.f32 %v1760, 0.0
  %v1799 = vadd.f32 %v1763, 0.0
  %v1800 = vadd.f32 %v1766, 0.0
  %v1801 = vadd.f32 %v1769, 0.0
  %v1802 = vmul.f32 %v1770, 0.071428575
  %v1803 = vmul.f32 %v1771, 0.071428575
  %v1804 = vmul.f32 %v1772, 0.071428575
  %v1805 = vmul.f32 %v1773, 0.071428575
  %v1806 = vmul.f32 %v1774, 0.071428575
  %v1807 = vmul.f32 %v1775, 0.071428575
  %v1808 = vmul.f32 %v1776, 0.071428575
  %v1809 = vmul.f32 %v1777, 0.071428575
  %v1810 = vmul.f32 %v1778, 0.071428575
  %v1811 = vmul.f32 %v1779, 0.071428575
  %v1812 = vmul.f32 %v1780, 0.071428575
  %v1813 = vmul.f32 %v1781, 0.071428575
  %v1814 = vmul.f32 %v1782, 0.071428575
  %v1815 = vmul.f32 %v1783, 0.071428575
  %v1816 = vmul.f32 %v1784, 0.071428575
  %v1817 = vmul.f32 %v1785, 0.071428575
  %v1818 = vmul.f32 %v1786, 0.071428575
  %v1819 = vmul.f32 %v1787, 0.071428575
  %v1820 = vmul.f32 %v1788, 0.071428575
  %v1821 = vmul.f32 %v1789, 0.071428575
  %v1822 = vmul.f32 %v1790, 0.071428575
  %v1823 = vmul.f32 %v1791, 0.071428575
  %v1824 = vmul.f32 %v1792, 0.071428575
  %v1825 = vmul.f32 %v1793, 0.071428575
  %v1826 = vmul.f32 %v1794, 0.071428575
  %v1827 = vmul.f32 %v1795, 0.071428575
  %v1828 = vmul.f32 %v1796, 0.071428575
  %v1829 = vmul.f32 %v1797, 0.071428575
  %v1830 = vmul.f32 %v1798, 0.071428575
  %v1831 = vmul.f32 %v1799, 0.071428575
  %v1832 = vmul.f32 %v1800, 0.071428575
  %v1833 = vmul.f32 %v1801, 0.071428575
  %v1866 = vlaneseq
  %v1867 = vand.u32 %v1866, 127
  %v1868 = vlaneseq
  %v1869 = vshrl.u32 %v1868, 7
  %v1870 = vsub.s32 %v1867, %v1869
  %v1871 = vrot.slane %v1802, %v1870
  %v1872 = vlaneseq
  %v1873 = vshrl.u32 %v1872, 7
  %v1874 = vsub.s32 %v1867, %v1873
  %v1875 = vrot.slane %v1803, %v1874
  %v1876 = vlaneseq
  %v1877 = vshrl.u32 %v1876, 7
  %v1878 = vsub.s32 %v1867, %v1877
  %v1879 = vrot.slane %v1804, %v1878
  %v1880 = vlaneseq
  %v1881 = vshrl.u32 %v1880, 7
  %v1882 = vsub.s32 %v1867, %v1881
  %v1883 = vrot.slane %v1805, %v1882
  %v1884 = vlaneseq
  %v1885 = vshrl.u32 %v1884, 7
  %v1886 = vsub.s32 %v1867, %v1885
  %v1887 = vrot.slane %v1806, %v1886
  %v1888 = vlaneseq
  %v1889 = vshrl.u32 %v1888, 7
  %v1890 = vsub.s32 %v1867, %v1889
  %v1891 = vrot.slane %v1807, %v1890
  %v1892 = vlaneseq
  %v1893 = vshrl.u32 %v1892, 7
  %v1894 = vsub.s32 %v1867, %v1893
  %v1895 = vrot.slane %v1808, %v1894
  %v1896 = vlaneseq
  %v1897 = vshrl.u32 %v1896, 7
  %v1898 = vsub.s32 %v1867, %v1897
  %v1899 = vrot.slane %v1809, %v1898
  %v1900 = vlaneseq
  %v1901 = vshrl.u32 %v1900, 7
  %v1902 = vsub.s32 %v1867, %v1901
  %v1903 = vrot.slane %v1810, %v1902
  %v1904 = vlaneseq
  %v1905 = vshrl.u32 %v1904, 7
  %v1906 = vsub.s32 %v1867, %v1905
  %v1907 = vrot.slane %v1811, %v1906
  %v1908 = vlaneseq
  %v1909 = vshrl.u32 %v1908, 7
  %v1910 = vsub.s32 %v1867, %v1909
  %v1911 = vrot.slane %v1812, %v1910
  %v1912 = vlaneseq
  %v1913 = vshrl.u32 %v1912, 7
  %v1914 = vsub.s32 %v1867, %v1913
  %v1915 = vrot.slane %v1813, %v1914
  %v1916 = vlaneseq
  %v1917 = vshrl.u32 %v1916, 7
  %v1918 = vsub.s32 %v1867, %v1917
  %v1919 = vrot.slane %v1814, %v1918
  %v1920 = vlaneseq
  %v1921 = vshrl.u32 %v1920, 7
  %v1922 = vsub.s32 %v1867, %v1921
  %v1923 = vrot.slane %v1815, %v1922
  %v1924 = vlaneseq
  %v1925 = vshrl.u32 %v1924, 7
  %v1926 = vsub.s32 %v1867, %v1925
  %v1927 = vrot.slane %v1816, %v1926
  %v1928 = vlaneseq
  %v1929 = vshrl.u32 %v1928, 7
  %v1930 = vsub.s32 %v1867, %v1929
  %v1931 = vrot.slane %v1817, %v1930
  %v1932 = vlaneseq
  %v1933 = vshrl.u32 %v1932, 7
  %v1934 = vsub.s32 %v1867, %v1933
  %v1935 = vrot.slane %v1818, %v1934
  %v1936 = vlaneseq
  %v1937 = vshrl.u32 %v1936, 7
  %v1938 = vsub.s32 %v1867, %v1937
  %v1939 = vrot.slane %v1819, %v1938
  %v1940 = vlaneseq
  %v1941 = vshrl.u32 %v1940, 7
  %v1942 = vsub.s32 %v1867, %v1941
  %v1943 = vrot.slane %v1820, %v1942
  %v1944 = vlaneseq
  %v1945 = vshrl.u32 %v1944, 7
  %v1946 = vsub.s32 %v1867, %v1945
  %v1947 = vrot.slane %v1821, %v1946
  %v1948 = vlaneseq
  %v1949 = vshrl.u32 %v1948, 7
  %v1950 = vsub.s32 %v1867, %v1949
  %v1951 = vrot.slane %v1822, %v1950
  %v1952 = vlaneseq
  %v1953 = vshrl.u32 %v1952, 7
  %v1954 = vsub.s32 %v1867, %v1953
  %v1955 = vrot.slane %v1823, %v1954
  %v1956 = vlaneseq
  %v1957 = vshrl.u32 %v1956, 7
  %v1958 = vsub.s32 %v1867, %v1957
  %v1959 = vrot.slane %v1824, %v1958
  %v1960 = vlaneseq
  %v1961 = vshrl.u32 %v1960, 7
  %v1962 = vsub.s32 %v1867, %v1961
  %v1963 = vrot.slane %v1825, %v1962
  %v1964 = vlaneseq
  %v1965 = vshrl.u32 %v1964, 7
  %v1966 = vsub.s32 %v1867, %v1965
  %v1967 = vrot.slane %v1826, %v1966
  %v1968 = vlaneseq
  %v1969 = vshrl.u32 %v1968, 7
  %v1970 = vsub.s32 %v1867, %v1969
  %v1971 = vrot.slane %v1827, %v1970
  %v1972 = vlaneseq
  %v1973 = vshrl.u32 %v1972, 7
  %v1974 = vsub.s32 %v1867, %v1973
  %v1975 = vrot.slane %v1828, %v1974
  %v1976 = vlaneseq
  %v1977 = vshrl.u32 %v1976, 7
  %v1978 = vsub.s32 %v1867, %v1977
  %v1979 = vrot.slane %v1829, %v1978
  %v1980 = vlaneseq
  %v1981 = vshrl.u32 %v1980, 7
  %v1982 = vsub.s32 %v1867, %v1981
  %v1983 = vrot.slane %v1830, %v1982
  %v1984 = vlaneseq
  %v1985 = vshrl.u32 %v1984, 7
  %v1986 = vsub.s32 %v1867, %v1985
  %v1987 = vrot.slane %v1831, %v1986
  %v1988 = vlaneseq
  %v1989 = vshrl.u32 %v1988, 7
  %v1990 = vsub.s32 %v1867, %v1989
  %v1991 = vrot.slane %v1832, %v1990
  %v1992 = vlaneseq
  %v1993 = vshrl.u32 %v1992, 7
  %v1994 = vsub.s32 %v1867, %v1993
  %v1995 = vrot.slane %v1833, %v1994
  %vm1996 = vcmask 1041409
  %v1997 = vsel %vm1996, %v1875, %v1871
  %vm1998 = vcmask 1042434
  %v1999 = vsel %vm1998, %v1879, %v1997
  %vm2000 = vcmask 1043459
  %v2001 = vsel %vm2000, %v1883, %v1999
  %vm2002 = vcmask 1044484
  %v2003 = vsel %vm2002, %v1887, %v2001
  %vm2004 = vcmask 1045509
  %v2005 = vsel %vm2004, %v1891, %v2003
  %vm2006 = vcmask 1046534
  %v2007 = vsel %vm2006, %v1895, %v2005
  %vm2008 = vcmask 1047559
  %v2009 = vsel %vm2008, %v1899, %v2007
  %v2010 = vsel %vm1996, %v1907, %v1903
  %v2011 = vsel %vm1998, %v1911, %v2010
  %v2012 = vsel %vm2000, %v1915, %v2011
  %v2013 = vsel %vm2002, %v1919, %v2012
  %v2014 = vsel %vm2004, %v1923, %v2013
  %v2015 = vsel %vm2006, %v1927, %v2014
  %v2016 = vsel %vm2008, %v1931, %v2015
  %v2017 = vsel %vm1996, %v1939, %v1935
  %v2018 = vsel %vm1998, %v1943, %v2017
  %v2019 = vsel %vm2000, %v1947, %v2018
  %v2020 = vsel %vm2002, %v1951, %v2019
  %v2021 = vsel %vm2004, %v1955, %v2020
  %v2022 = vsel %vm2006, %v1959, %v2021
  %v2023 = vsel %vm2008, %v1963, %v2022
  %v2024 = vsel %vm1996, %v1971, %v1967
  %v2025 = vsel %vm1998, %v1975, %v2024
  %v2026 = vsel %vm2000, %v1979, %v2025
  %v2027 = vsel %vm2002, %v1983, %v2026
  %v2028 = vsel %vm2004, %v1987, %v2027
  %v2029 = vsel %vm2006, %v1991, %v2028
  %v2030 = vsel %vm2008, %v1995, %v2029
  %vm2035 = vcmask 15360
  %2036 = vst.msk [vmem:[%s3] sm:$0xff] %vm2035, %v2009
  %2037 = vst.msk [vmem:[%s3 + $0x8] sm:$0xff] %vm2035, %v2016
  %2038 = vst.msk [vmem:[%s3 + $0x10] sm:$0xff] %vm2035, %v2023
  %2039 = vst.msk [vmem:[%s3 + $0x18] sm:$0xff] %vm2035, %v2030
  // Predicated region
  $region14: #{tpu_custom_call.1} parent=0 // pred_check
    _
  $region15: #{tpu_custom_call.1} parent=0 // pred_check_branch
    %2041 = sbr.rel (0) target = $region17
  $region16: #{tpu_custom_call.1} parent=0 // pred_region
    _
  $region17: #{tpu_custom_call.1} parent=0 // pred_fallthru
    _
  // Predicated region
  $region18: #{tpu_custom_call.1} parent=0 // pred_check
    _
  $region19: #{tpu_custom_call.1} parent=0 // pred_check_branch
    %2043 = sbr.rel (0) target = $region21
  $region20: #{tpu_custom_call.1} parent=0 // pred_region
    _
  $region21: #{tpu_custom_call.1} parent=0 // pred_fallthru
    _

</llo_original>
